<compile_context>
chip_gen: v5e
topology: v5e:2x2
jax: 0.10.0
libtpu: 0.0.40
codegen_flags: <defaults>
</compile_context>

<pallas_src>
import functools

import jax
import jax.numpy as jnp
from jax import lax
from jax.experimental import pallas as pl
from jax.experimental.pallas import tpu as pltpu

EPS = 1e-5
LANE = 128


# ---------------------------------------------------------------------------
# Fused Pallas kernel (one fold of B images per grid step)
# ---------------------------------------------------------------------------

def _fused_coupling_kernel(xin_ref, w1_ref, w2_ref, sin_ref, bin_ref,
                           s1_ref, b1_ref, b2_ref, mask_ref, out_ref, *, wp, c2):
    """Layout: (channels, L) slabs; L = B_fold * lpix lanes, lpix = 128-rounded (H+2)*(W+2).

    xin holds [on | off] along channels in padded/flattened/lane-folded layout.
    Border lanes of the output `on` half contain on + garbage shift; the wrapper crops them.
    """
    L = xin_ref.shape[2]

    xin = xin_ref[0]                     # (C, L) f32
    on = xin[:c2]                        # (c2, L)
    off = xin[c2:]                       # (c2, L)
    mask = mask_ref[...]                 # (1, L): 1 on interior pixels, 0 on border/tail

    # in_bn (eval mode, folded) then relu(+bn) / relu(-bn); border/tail lanes zeroed so the
    # lane rolls below emulate SAME zero padding.
    bn = off * sin_ref[...] + bin_ref[...]
    act0 = jnp.concatenate([jnp.maximum(bn, 0.0), jnp.maximum(-bn, 0.0)], axis=0) * mask

    # conv1 (3x3 SAME, no bias, weight-normalized): stack the 9 lane-rolled tap slabs along
    # sublanes and do ONE bf16 MXU dot with tap-stacked weights (mid, 9*2*c2).
    taps = []
    for t in range(9):
        ky, kx = divmod(t, 3)
        d = (ky - 1) * wp + (kx - 1)
        taps.append(act0 if d == 0 else pltpu.roll(act0, (-d) % L, axis=1))
    stack = jnp.concatenate(taps, axis=0).astype(jnp.bfloat16)        # (9*2*c2, L)
    acc1 = jnp.dot(w1_ref[...], stack, preferred_element_type=jnp.float32)   # (mid, L) f32

    # bn1 (eval, folded) + ReLU; re-zero border so conv2 also sees SAME zero padding.
    h1 = (jnp.maximum(acc1 * s1_ref[...] + b1_ref[...], 0.0) * mask).astype(jnp.bfloat16)

    # conv2 (3x3 SAME, + bias): ONE dot with tap-stacked weights (9*c2, mid), then
    # roll-and-sum the nine small (c2, L) per-tap outputs (roll the output, not h1).
    q = jnp.dot(w2_ref[...], h1, preferred_element_type=jnp.float32)         # (9*c2, L) f32
    shift = None
    for t in range(9):
        ky, kx = divmod(t, 3)
        d = (ky - 1) * wp + (kx - 1)
        qt = q[t * c2:(t + 1) * c2]
        qt = qt if d == 0 else pltpu.roll(qt, (-d) % L, axis=1)
        shift = qt if shift is None else shift + qt

    # additive coupling (reverse=False): on = on + shift ; off passes through unchanged.
    out_ref[0] = jnp.concatenate([on + shift + b2_ref[...], off], axis=0)


# ---------------------------------------------------------------------------
# Wrapper
# ---------------------------------------------------------------------------

def _const_spec(shape):
    nd = len(shape)
    return pl.BlockSpec(shape, lambda i: (0,) * nd)


def channelwise_additive_coupling_forward(x, params, b_fold=None):
    """Forward pass (mask_config=1, reverse=False, coupling_bn=False, eval). x: NCHW f32."""
    n, c, h, w = x.shape
    c2 = c // 2
    mid = params['w1'].shape[0]
    hp, wp = h + 2, w + 2
    pp = hp * wp
    lpix = ((pp + LANE - 1) // LANE) * LANE          # per-image 128-aligned pixel slab

    # Roll-wrap safety invariant: the farthest tap (+/- (wp+1) lanes) read from any interior
    # pixel stays inside that image's own lpix block, so lane-folding images never mixes
    # data into a pixel that survives the final crop.
    assert h * wp + w + (wp + 1) < lpix, "padded/lane-rounded layout violates roll-wrap bound"

    if b_fold is None:
        # keep >=2 grid steps so both v7x TensorCores get work; cap the fold so the per-step
        # working set (~(10*C + mid + 9*c2) * b_fold*lpix * 4B) stays tiny vs VMEM.
        b_fold = max(1, min(n // 2, 8))
    n_steps = -(-n // b_fold)
    n_pad = n_steps * b_fold - n
    L = b_fold * lpix

    # Build the (n_steps, C, b_fold*lpix) padded / flattened / lane-folded slab.
    xp = jnp.pad(x, ((0, n_pad), (0, 0), (1, 1), (1, 1))).reshape(n_steps * b_fold, c, pp)
    xp = jnp.pad(xp, ((0, 0), (0, 0), (0, lpix - pp)))
    xp = xp.reshape(n_steps, b_fold, c, lpix).transpose(0, 2, 1, 3).reshape(n_steps, c, L)

    # Interior-pixel mask (1 inside the HxW image, 0 on SAME border / lane tail), tiled per fold.
    mask = jnp.pad(jnp.ones((h, w), jnp.float32), ((1, 1), (1, 1))).reshape(1, pp)
    mask = jnp.tile(jnp.pad(mask, ((0, 0), (0, lpix - pp))), (1, b_fold))

    # Tap-stacked bf16 conv weights:
    #   w1s[:, t*C + ch] = w1[o, ch, ky, kx],  w2s[t*c2 + o, m] = w2[o, m, ky, kx],  t = ky*3+kx
    w1s = jnp.transpose(params['w1'], (0, 2, 3, 1)).reshape(mid, 9 * c).astype(jnp.bfloat16)
    w2s = jnp.transpose(params['w2'], (2, 3, 0, 1)).reshape(9 * c2, mid).astype(jnp.bfloat16)

    # Eval-mode BatchNorm folded into per-channel scale/bias column vectors.
    scale_in = (params['in_gamma'] / jnp.sqrt(params['in_rv'] + EPS)).reshape(c2, 1)
    bias_in = params['in_beta'].reshape(c2, 1) - params['in_rm'].reshape(c2, 1) * scale_in
    scale1 = (params['g1'] / jnp.sqrt(params['rv1'] + EPS)).reshape(mid, 1)
    bias1 = params['b1'].reshape(mid, 1) - params['rm1'].reshape(mid, 1) * scale1
    bias2 = params['bias2'].reshape(c2, 1)

    img_spec = pl.BlockSpec((1, c, L), lambda i: (i, 0, 0))

    out_f = pl.pallas_call(
        functools.partial(_fused_coupling_kernel, wp=wp, c2=c2),
        out_shape=jax.ShapeDtypeStruct((n_steps, c, L), jnp.float32),
        grid=(n_steps,),
        in_specs=[img_spec,
                  _const_spec((mid, 9 * c)), _const_spec((9 * c2, mid)),
                  _const_spec((c2, 1)), _const_spec((c2, 1)),
                  _const_spec((mid, 1)), _const_spec((mid, 1)), _const_spec((c2, 1)),
                  _const_spec((1, L))],
        out_specs=img_spec,
        compiler_params=pltpu.CompilerParams(dimension_semantics=("parallel",)),
    )(xp, w1s, w2s, scale_in, bias_in, scale1, bias1, bias2, mask)

    # Undo the lane-folding and crop the SAME border / lane tail (single pass, no concat:
    # the kernel already emitted both the transformed `on` half and the `off` passthrough).
    out = out_f.reshape(n_steps, c, b_fold, lpix).transpose(0, 2, 1, 3)
    out = out.reshape(n_steps * b_fold, c, lpix)[:n, :, :pp]
    x_out = out.reshape(n, c, hp, wp)[:, :, 1:h + 1, 1:w + 1]

    # Additive coupling with coupling_bn=False: log|det J| is identically zero.  Returned as
    # a scalar (broadcast in the caller if a full tensor is needed) to avoid an x-sized HBM
    # write of pure ceremony.
    return x_out, jnp.float32(0.0)


# ---------------------------------------------------------------------------
# Pure-JAX reference (for self-check)
# ---------------------------------------------------------------------------

def reference_forward(x, params):
    c = x.shape[1]
    c2 = c // 2
    on, off = x[:, :c2], x[:, c2:]

    def bn(v, gamma, beta, rm, rv):
        return ((v - rm[None, :, None, None]) / jnp.sqrt(rv[None, :, None, None] + EPS)
                * gamma[None, :, None, None] + beta[None, :, None, None])

    off_bn = bn(off, params['in_gamma'], params['in_beta'], params['in_rm'], params['in_rv'])
    hh = jax.nn.relu(jnp.concatenate([off_bn, -off_bn], axis=1))
    dn = ('NCHW', 'OIHW', 'NCHW')
    h1 = lax.conv_general_dilated(hh, params['w1'], (1, 1), 'SAME', dimension_numbers=dn,
                                  precision=lax.Precision.HIGHEST)
    h1 = jax.nn.relu(bn(h1, params['g1'], params['b1'], params['rm1'], params['rv1']))
    shift = lax.conv_general_dilated(h1, params['w2'], (1, 1), 'SAME', dimension_numbers=dn,
                                     precision=lax.Precision.HIGHEST)
    shift = shift + params['bias2'][None, :, None, None]
    return jnp.concatenate([on + shift, off], axis=1)


# ---------------------------------------------------------------------------
# Main
# ---------------------------------------------------------------------------

if __name__ == "__main__":
    # batch=4 exercises the batch-folding path (2 images per grid step, 2 parallel steps).
    N, C, H, W = 4, 4, 16, 16      # in_out_dim = 4
    C2, MID = C // 2, 32           # mid_dim = 32

    key = jax.random.PRNGKey(0)
    ks = jax.random.split(key, 12)
    x = jax.random.normal(ks[0], (N, C, H, W), dtype=jnp.float32)

    # in_bn (BatchNorm2d(C2)) — deterministic synthetic running stats / affine
    in_gamma = 1.0 + 0.1 * jax.random.normal(ks[1], (C2,), jnp.float32)
    in_beta = 0.1 * jax.random.normal(ks[2], (C2,), jnp.float32)
    in_rm = 0.1 * jax.random.normal(ks[3], (C2,), jnp.float32)
    in_rv = jax.nn.softplus(jax.random.normal(ks[4], (C2,), jnp.float32)) + 0.5

    # conv1: WeightNormConv2d(C, MID, 3x3, bias=False, scale=False) -> w = v / ||v||_per_out
    v1 = 0.1 * jax.random.normal(ks[5], (MID, C, 3, 3), jnp.float32)
    w1 = v1 / jnp.sqrt(jnp.sum(v1 * v1, axis=(1, 2, 3), keepdims=True))

    # bn1 (BatchNorm2d(MID))
    g1 = 1.0 + 0.1 * jax.random.normal(ks[6], (MID,), jnp.float32)
    b1 = 0.1 * jax.random.normal(ks[7], (MID,), jnp.float32)
    rm1 = 0.1 * jax.random.normal(ks[8], (MID,), jnp.float32)
    rv1 = jax.nn.softplus(jax.random.normal(ks[9], (MID,), jnp.float32)) + 0.5

    # conv2: WeightNormConv2d(MID, C2, 3x3, bias=True, scale=True) -> g = ||v|| => w = v
    w2 = 0.1 * jax.random.normal(ks[10], (C2, MID, 3, 3), jnp.float32)
    bias2 = 0.1 * jax.random.normal(ks[11], (C2,), jnp.float32)

    params = dict(in_gamma=in_gamma, in_beta=in_beta, in_rm=in_rm, in_rv=in_rv,
                  w1=w1, g1=g1, b1=b1, rm1=rm1, rv1=rv1, w2=w2, bias2=bias2)

    fwd = jax.jit(channelwise_additive_coupling_forward)
    x_out, log_diag_J = fwd(x, params)
    jax.block_until_ready((x_out, log_diag_J))

    # self-check against the f32 pure-JAX reference.  Tolerance reflects the deliberate
    # bf16 MXU-operand cast (f32 accumulation); observed error is ~1e-2 worst-case here.
    x_ref = reference_forward(x, params)
    assert x_out.shape == x.shape
    max_err = float(jnp.max(jnp.abs(x_out - x_ref)))
    assert max_err < 5e-2, f"max abs err {max_err}"
    assert float(log_diag_J) == 0.0

    print("KERNEL_OK")
</pallas_src>

<mosaic_0001>
module attributes {stable_mosaic.version = 11 : i64} {
  func.func @_fused_coupling_kernel(%arg0: i32, %arg1: memref<1x4x768xf32, #tpu.memory_space<vmem>>, %arg2: memref<32x36xbf16, #tpu.memory_space<vmem>>, %arg3: memref<18x32xbf16, #tpu.memory_space<vmem>>, %arg4: memref<2x1xf32, #tpu.memory_space<vmem>>, %arg5: memref<2x1xf32, #tpu.memory_space<vmem>>, %arg6: memref<32x1xf32, #tpu.memory_space<vmem>>, %arg7: memref<32x1xf32, #tpu.memory_space<vmem>>, %arg8: memref<2x1xf32, #tpu.memory_space<vmem>>, %arg9: memref<1x768xf32, #tpu.memory_space<vmem>>, %arg10: memref<1x4x768xf32, #tpu.memory_space<vmem>>) attributes {dimension_semantics = [#tpu.dimension_semantics<parallel>], iteration_bounds = array<i64: 2>, scalar_prefetch = 0 : i64, scratch_operands = 0 : i64, tpu.core_type = #tpu.core_type<tc>, window_params = [{transform_indices = @transform_0, window_bounds = array<i64: 1, 4, 768>}, {pipeline_mode = #tpu.pipeline_mode<synchronous>, transform_indices = @transform_1, window_bounds = array<i64: 32, 36>}, {pipeline_mode = #tpu.pipeline_mode<synchronous>, transform_indices = @transform_2, window_bounds = array<i64: 18, 32>}, {pipeline_mode = #tpu.pipeline_mode<synchronous>, transform_indices = @transform_3, window_bounds = array<i64: 2, 1>}, {pipeline_mode = #tpu.pipeline_mode<synchronous>, transform_indices = @transform_4, window_bounds = array<i64: 2, 1>}, {pipeline_mode = #tpu.pipeline_mode<synchronous>, transform_indices = @transform_5, window_bounds = array<i64: 32, 1>}, {pipeline_mode = #tpu.pipeline_mode<synchronous>, transform_indices = @transform_6, window_bounds = array<i64: 32, 1>}, {pipeline_mode = #tpu.pipeline_mode<synchronous>, transform_indices = @transform_7, window_bounds = array<i64: 2, 1>}, {pipeline_mode = #tpu.pipeline_mode<synchronous>, transform_indices = @transform_8, window_bounds = array<i64: 1, 768>}, {transform_indices = @transform_9, window_bounds = array<i64: 1, 4, 768>}]} {
    %c0 = arith.constant 0 : index
    %c0_0 = arith.constant 0 : index
    %c0_1 = arith.constant 0 : index
    %0 = vector.load %arg1[%c0, %c0_0, %c0_1] : memref<1x4x768xf32, #tpu.memory_space<vmem>>, vector<1x4x768xf32>
    %1 = vector.shape_cast %0 : vector<1x4x768xf32> to vector<4x768xf32>
    %2 = vector.extract_strided_slice %1 {offsets = [0, 0], sizes = [2, 768], strides = [1, 1]} : vector<4x768xf32> to vector<2x768xf32>
    %3 = vector.extract_strided_slice %1 {offsets = [2, 0], sizes = [2, 768], strides = [1, 1]} : vector<4x768xf32> to vector<2x768xf32>
    %c0_2 = arith.constant 0 : index
    %c0_3 = arith.constant 0 : index
    %4 = vector.load %arg9[%c0_2, %c0_3] : memref<1x768xf32, #tpu.memory_space<vmem>>, vector<1x768xf32>
    %c0_4 = arith.constant 0 : index
    %c0_5 = arith.constant 0 : index
    %5 = vector.load %arg4[%c0_4, %c0_5] : memref<2x1xf32, #tpu.memory_space<vmem>>, vector<2x1xf32>
    %6 = vector.broadcast %5 : vector<2x1xf32> to vector<2x768xf32>
    %7 = arith.mulf %3, %6 : vector<2x768xf32>
    %c0_6 = arith.constant 0 : index
    %c0_7 = arith.constant 0 : index
    %8 = vector.load %arg5[%c0_6, %c0_7] : memref<2x1xf32, #tpu.memory_space<vmem>>, vector<2x1xf32>
    %9 = vector.broadcast %8 : vector<2x1xf32> to vector<2x768xf32>
    %10 = arith.addf %7, %9 : vector<2x768xf32>
    %cst = arith.constant 0.000000e+00 : f32
    %11 = vector.broadcast %cst : f32 to vector<2x768xf32>
    %12 = arith.maximumf %10, %11 : vector<2x768xf32>
    %cst_8 = arith.constant 0.000000e+00 : f32
    %13 = vector.broadcast %cst_8 : f32 to vector<2x768xf32>
    %14 = arith.subf %13, %10 : vector<2x768xf32>
    %cst_9 = arith.constant 0.000000e+00 : f32
    %15 = vector.broadcast %cst_9 : f32 to vector<2x768xf32>
    %16 = arith.maximumf %14, %15 : vector<2x768xf32>
    %17 = tpu.concatenate %12, %16 in 0 : vector<2x768xf32>, vector<2x768xf32> -> vector<4x768xf32>
    %18 = vector.broadcast %4 : vector<1x768xf32> to vector<4x768xf32>
    %19 = arith.mulf %17, %18 : vector<4x768xf32>
    %c19_i32 = arith.constant 19 : i32
    %20 = tpu.dynamic_rotate %19 by %c19_i32 dim 1 : vector<4x768xf32>, i32 -> vector<4x768xf32>
    %c18_i32 = arith.constant 18 : i32
    %21 = tpu.dynamic_rotate %19 by %c18_i32 dim 1 : vector<4x768xf32>, i32 -> vector<4x768xf32>
    %c17_i32 = arith.constant 17 : i32
    %22 = tpu.dynamic_rotate %19 by %c17_i32 dim 1 : vector<4x768xf32>, i32 -> vector<4x768xf32>
    %c1_i32 = arith.constant 1 : i32
    %23 = tpu.dynamic_rotate %19 by %c1_i32 dim 1 : vector<4x768xf32>, i32 -> vector<4x768xf32>
    %c767_i32 = arith.constant 767 : i32
    %24 = tpu.dynamic_rotate %19 by %c767_i32 dim 1 : vector<4x768xf32>, i32 -> vector<4x768xf32>
    %c751_i32 = arith.constant 751 : i32
    %25 = tpu.dynamic_rotate %19 by %c751_i32 dim 1 : vector<4x768xf32>, i32 -> vector<4x768xf32>
    %c750_i32 = arith.constant 750 : i32
    %26 = tpu.dynamic_rotate %19 by %c750_i32 dim 1 : vector<4x768xf32>, i32 -> vector<4x768xf32>
    %c749_i32 = arith.constant 749 : i32
    %27 = tpu.dynamic_rotate %19 by %c749_i32 dim 1 : vector<4x768xf32>, i32 -> vector<4x768xf32>
    %28 = tpu.concatenate %20, %21, %22, %23, %19, %24, %25, %26, %27 in 0 : vector<4x768xf32>, vector<4x768xf32>, vector<4x768xf32>, vector<4x768xf32>, vector<4x768xf32>, vector<4x768xf32>, vector<4x768xf32>, vector<4x768xf32>, vector<4x768xf32> -> vector<36x768xf32>
    %29 = arith.truncf %28 : vector<36x768xf32> to vector<36x768xbf16>
    %c0_10 = arith.constant 0 : index
    %c0_11 = arith.constant 0 : index
    %30 = vector.load %arg2[%c0_10, %c0_11] : memref<32x36xbf16, #tpu.memory_space<vmem>>, vector<32x36xbf16>
    %cst_12 = arith.constant dense<0.000000e+00> : vector<32x768xf32>
    %31 = tpu.matmul %30, %29, %cst_12 {dimension_numbers = #tpu.dot_dimension_numbers<[1], [0], [0], [1], [0, 0, 1, 1], [], []>} : vector<32x36xbf16>, vector<36x768xbf16>, vector<32x768xf32> -> vector<32x768xf32>
    %c0_13 = arith.constant 0 : index
    %c0_14 = arith.constant 0 : index
    %32 = vector.load %arg6[%c0_13, %c0_14] : memref<32x1xf32, #tpu.memory_space<vmem>>, vector<32x1xf32>
    %33 = vector.broadcast %32 : vector<32x1xf32> to vector<32x768xf32>
    %34 = arith.mulf %31, %33 : vector<32x768xf32>
    %c0_15 = arith.constant 0 : index
    %c0_16 = arith.constant 0 : index
    %35 = vector.load %arg7[%c0_15, %c0_16] : memref<32x1xf32, #tpu.memory_space<vmem>>, vector<32x1xf32>
    %36 = vector.broadcast %35 : vector<32x1xf32> to vector<32x768xf32>
    %37 = arith.addf %34, %36 : vector<32x768xf32>
    %cst_17 = arith.constant 0.000000e+00 : f32
    %38 = vector.broadcast %cst_17 : f32 to vector<32x768xf32>
    %39 = arith.maximumf %37, %38 : vector<32x768xf32>
    %40 = vector.broadcast %4 : vector<1x768xf32> to vector<32x768xf32>
    %41 = arith.mulf %39, %40 : vector<32x768xf32>
    %42 = arith.truncf %41 : vector<32x768xf32> to vector<32x768xbf16>
    %c0_18 = arith.constant 0 : index
    %c0_19 = arith.constant 0 : index
    %43 = vector.load %arg3[%c0_18, %c0_19] : memref<18x32xbf16, #tpu.memory_space<vmem>>, vector<18x32xbf16>
    %cst_20 = arith.constant dense<0.000000e+00> : vector<18x768xf32>
    %44 = tpu.matmul %43, %42, %cst_20 {dimension_numbers = #tpu.dot_dimension_numbers<[1], [0], [0], [1], [0, 0, 1, 1], [], []>} : vector<18x32xbf16>, vector<32x768xbf16>, vector<18x768xf32> -> vector<18x768xf32>
    %45 = vector.extract_strided_slice %44 {offsets = [0, 0], sizes = [2, 768], strides = [1, 1]} : vector<18x768xf32> to vector<2x768xf32>
    %c19_i32_21 = arith.constant 19 : i32
    %46 = tpu.dynamic_rotate %45 by %c19_i32_21 dim 1 : vector<2x768xf32>, i32 -> vector<2x768xf32>
    %47 = vector.extract_strided_slice %44 {offsets = [2, 0], sizes = [2, 768], strides = [1, 1]} : vector<18x768xf32> to vector<2x768xf32>
    %c18_i32_22 = arith.constant 18 : i32
    %48 = tpu.dynamic_rotate %47 by %c18_i32_22 dim 1 : vector<2x768xf32>, i32 -> vector<2x768xf32>
    %49 = arith.addf %46, %48 : vector<2x768xf32>
    %50 = vector.extract_strided_slice %44 {offsets = [4, 0], sizes = [2, 768], strides = [1, 1]} : vector<18x768xf32> to vector<2x768xf32>
    %c17_i32_23 = arith.constant 17 : i32
    %51 = tpu.dynamic_rotate %50 by %c17_i32_23 dim 1 : vector<2x768xf32>, i32 -> vector<2x768xf32>
    %52 = arith.addf %49, %51 : vector<2x768xf32>
    %53 = vector.extract_strided_slice %44 {offsets = [6, 0], sizes = [2, 768], strides = [1, 1]} : vector<18x768xf32> to vector<2x768xf32>
    %c1_i32_24 = arith.constant 1 : i32
    %54 = tpu.dynamic_rotate %53 by %c1_i32_24 dim 1 : vector<2x768xf32>, i32 -> vector<2x768xf32>
    %55 = arith.addf %52, %54 : vector<2x768xf32>
    %56 = vector.extract_strided_slice %44 {offsets = [8, 0], sizes = [2, 768], strides = [1, 1]} : vector<18x768xf32> to vector<2x768xf32>
    %57 = arith.addf %55, %56 : vector<2x768xf32>
    %58 = vector.extract_strided_slice %44 {offsets = [10, 0], sizes = [2, 768], strides = [1, 1]} : vector<18x768xf32> to vector<2x768xf32>
    %c767_i32_25 = arith.constant 767 : i32
    %59 = tpu.dynamic_rotate %58 by %c767_i32_25 dim 1 : vector<2x768xf32>, i32 -> vector<2x768xf32>
    %60 = arith.addf %57, %59 : vector<2x768xf32>
    %61 = vector.extract_strided_slice %44 {offsets = [12, 0], sizes = [2, 768], strides = [1, 1]} : vector<18x768xf32> to vector<2x768xf32>
    %c751_i32_26 = arith.constant 751 : i32
    %62 = tpu.dynamic_rotate %61 by %c751_i32_26 dim 1 : vector<2x768xf32>, i32 -> vector<2x768xf32>
    %63 = arith.addf %60, %62 : vector<2x768xf32>
    %64 = vector.extract_strided_slice %44 {offsets = [14, 0], sizes = [2, 768], strides = [1, 1]} : vector<18x768xf32> to vector<2x768xf32>
    %c750_i32_27 = arith.constant 750 : i32
    %65 = tpu.dynamic_rotate %64 by %c750_i32_27 dim 1 : vector<2x768xf32>, i32 -> vector<2x768xf32>
    %66 = arith.addf %63, %65 : vector<2x768xf32>
    %67 = vector.extract_strided_slice %44 {offsets = [16, 0], sizes = [2, 768], strides = [1, 1]} : vector<18x768xf32> to vector<2x768xf32>
    %c749_i32_28 = arith.constant 749 : i32
    %68 = tpu.dynamic_rotate %67 by %c749_i32_28 dim 1 : vector<2x768xf32>, i32 -> vector<2x768xf32>
    %69 = arith.addf %66, %68 : vector<2x768xf32>
    %70 = arith.addf %2, %69 : vector<2x768xf32>
    %c0_29 = arith.constant 0 : index
    %c0_30 = arith.constant 0 : index
    %71 = vector.load %arg8[%c0_29, %c0_30] : memref<2x1xf32, #tpu.memory_space<vmem>>, vector<2x1xf32>
    %72 = vector.broadcast %71 : vector<2x1xf32> to vector<2x768xf32>
    %73 = arith.addf %70, %72 : vector<2x768xf32>
    %74 = tpu.concatenate %73, %3 in 0 : vector<2x768xf32>, vector<2x768xf32> -> vector<4x768xf32>
    %c0_31 = arith.constant 0 : index
    %c0_32 = arith.constant 0 : index
    %c0_33 = arith.constant 0 : index
    %75 = vector.load %arg10[%c0_31, %c0_32, %c0_33] : memref<1x4x768xf32, #tpu.memory_space<vmem>>, vector<1x4x768xf32>
    %76 = vector.shape_cast %75 : vector<1x4x768xf32> to vector<4x768xf32>
    %77 = vector.shape_cast %74 : vector<4x768xf32> to vector<1x4x768xf32>
    tpu.vector_store %arg10[%c0_31, %c0_32, %c0_33], %77 {strides = array<i32>} : memref<1x4x768xf32, #tpu.memory_space<vmem>>, vector<1x4x768xf32>,
    return
  }
  func.func @transform_0(%arg0: i32) -> (i32, i32, i32) {
    %c0_i32 = arith.constant 0 : i32
    %c0_i32_0 = arith.constant 0 : i32
    %c0_i32_1 = arith.constant 0 : i32
    return %arg0, %c0_i32, %c0_i32_0 : i32, i32, i32
  }
  func.func @transform_1(%arg0: i32) -> (i32, i32) {
    %c0_i32 = arith.constant 0 : i32
    %c0_i32_0 = arith.constant 0 : i32
    %c0_i32_1 = arith.constant 0 : i32
    return %c0_i32, %c0_i32_0 : i32, i32
  }
  func.func @transform_2(%arg0: i32) -> (i32, i32) {
    %c0_i32 = arith.constant 0 : i32
    %c0_i32_0 = arith.constant 0 : i32
    %c0_i32_1 = arith.constant 0 : i32
    return %c0_i32, %c0_i32_0 : i32, i32
  }
  func.func @transform_3(%arg0: i32) -> (i32, i32) {
    %c0_i32 = arith.constant 0 : i32
    %c0_i32_0 = arith.constant 0 : i32
    %c0_i32_1 = arith.constant 0 : i32
    return %c0_i32, %c0_i32_0 : i32, i32
  }
  func.func @transform_4(%arg0: i32) -> (i32, i32) {
    %c0_i32 = arith.constant 0 : i32
    %c0_i32_0 = arith.constant 0 : i32
    %c0_i32_1 = arith.constant 0 : i32
    return %c0_i32, %c0_i32_0 : i32, i32
  }
  func.func @transform_5(%arg0: i32) -> (i32, i32) {
    %c0_i32 = arith.constant 0 : i32
    %c0_i32_0 = arith.constant 0 : i32
    %c0_i32_1 = arith.constant 0 : i32
    return %c0_i32, %c0_i32_0 : i32, i32
  }
  func.func @transform_6(%arg0: i32) -> (i32, i32) {
    %c0_i32 = arith.constant 0 : i32
    %c0_i32_0 = arith.constant 0 : i32
    %c0_i32_1 = arith.constant 0 : i32
    return %c0_i32, %c0_i32_0 : i32, i32
  }
  func.func @transform_7(%arg0: i32) -> (i32, i32) {
    %c0_i32 = arith.constant 0 : i32
    %c0_i32_0 = arith.constant 0 : i32
    %c0_i32_1 = arith.constant 0 : i32
    return %c0_i32, %c0_i32_0 : i32, i32
  }
  func.func @transform_8(%arg0: i32) -> (i32, i32) {
    %c0_i32 = arith.constant 0 : i32
    %c0_i32_0 = arith.constant 0 : i32
    %c0_i32_1 = arith.constant 0 : i32
    return %c0_i32, %c0_i32_0 : i32, i32
  }
  func.func @transform_9(%arg0: i32) -> (i32, i32, i32) {
    %c0_i32 = arith.constant 0 : i32
    %c0_i32_0 = arith.constant 0 : i32
    %c0_i32_1 = arith.constant 0 : i32
    return %arg0, %c0_i32, %c0_i32_0 : i32, i32, i32
  }
}

</mosaic_0001>

<llo_original>
// kernel: sub.3
$region0: #{sub.3}
  #allocation0 [shape = 's32[1]{0}', space=sflag, size = 0x4, scoped, tag = 'scoped memory for sub.3']
  %s0 = inlined_call_operand.vmem [shape: f32[32,1], index: 0, kind: input, shape index: {}]
  %s1 = inlined_call_operand.vmem [shape: f32[32,1], index: 1, kind: input, shape index: {}]
  %s2 = inlined_call_operand.vmem [shape: f32[32,1], index: 2, kind: output, shape index: {}]
  %v3 = vld [vmem:[%s0] sm:$0xff]
  %v4 = vld [vmem:[%s1] sm:$0xff]
  %5 = xla_tuple %v3, %v4
  %6 = xla_tuple %5
  %v7 = vsub.f32 %v3, %v4
  %8 = xla_tuple %v7
  %9 = vst [vmem:[%s2] sm:$0xff] %v7
  %s10 = scalar_lea.vmem %s0, 8
  %v11 = vld [vmem:[%s10] sm:$0xff]
  %s12 = scalar_lea.vmem %s1, 8
  %v13 = vld [vmem:[%s12] sm:$0xff]
  %14 = xla_tuple %v11, %v13
  %15 = xla_tuple %14
  %v16 = vsub.f32 %v11, %v13
  %17 = xla_tuple %v16
  %s18 = scalar_lea.vmem %s2, 8
  %19 = vst [vmem:[%s18] sm:$0xff] %v16
  %s20 = scalar_lea.vmem %s0, 16
  %v21 = vld [vmem:[%s20] sm:$0xff]
  %s22 = scalar_lea.vmem %s1, 16
  %v23 = vld [vmem:[%s22] sm:$0xff]
  %24 = xla_tuple %v21, %v23
  %25 = xla_tuple %24
  %v26 = vsub.f32 %v21, %v23
  %27 = xla_tuple %v26
  %s28 = scalar_lea.vmem %s2, 16
  %29 = vst [vmem:[%s28] sm:$0xff] %v26
  %s30 = scalar_lea.vmem %s0, 24
  %v31 = vld [vmem:[%s30] sm:$0xff]
  %s32 = scalar_lea.vmem %s1, 24
  %v33 = vld [vmem:[%s32] sm:$0xff]
  %34 = xla_tuple %v31, %v33
  %35 = xla_tuple %34
  %v36 = vsub.f32 %v31, %v33
  %37 = xla_tuple %v36
  %s38 = scalar_lea.vmem %s2, 24
  %39 = vst [vmem:[%s38] sm:$0xff] %v36

// kernel: channelwise_additive_coupling_forward.1
$region0: #{channelwise_additive_coupling_forward.1}
  #allocation0 [shape = 'u32[]', space=smem, size = 0x4, offset = 0x4, fixed_abs, tag = 'smem constant byte address 0x4 - core index']
  #allocation1 [shape = 'u32[72,128]{1,0:T(1,128)}', space=vmem, size = 0x9000, scoped, tag = 'internal scratch']
  %s0 = inlined_call_operand.vmem [shape: f32[2,4,768], index: 0, kind: input, shape index: {}]
  %s1 = inlined_call_operand.vmem [shape: bf16[32,36], index: 1, kind: input, shape index: {}]
  %s2 = inlined_call_operand.vmem [shape: bf16[18,32], index: 2, kind: input, shape index: {}]
  %s3 = inlined_call_operand.vmem [shape: f32[2,1], index: 3, kind: input, shape index: {}]
  %s4 = inlined_call_operand.vmem [shape: f32[2,1], index: 4, kind: input, shape index: {}]
  %s5 = inlined_call_operand.vmem [shape: f32[32,1], index: 5, kind: input, shape index: {}]
  %s6 = inlined_call_operand.vmem [shape: f32[32,1], index: 6, kind: input, shape index: {}]
  %s7 = inlined_call_operand.vmem [shape: f32[2,1], index: 7, kind: input, shape index: {}]
  %s8 = inlined_call_operand.vmem [shape: f32[1,768], index: 8, kind: input, shape index: {}]
  %s9 = inlined_call_operand.vmem [shape: f32[2,4,768], index: 9, kind: output, shape index: {}]
  %s10 = sld [smem:[#allocation0]]
  $region69: #{channelwise_additive_coupling_forward.1} parent=0
    _
  %s12 = ssub.s32 1, %s10
  %s13 = scalar_select 0, %s12, %s10
  loop: start=0, step=1, limit=4
  $region2: #{channelwise_additive_coupling_forward.1} parent=0 // loop_pre_header
    _
  $region3: #{channelwise_additive_coupling_forward.1} parent=0 // loop_header
    %s15 = sphi 0, %s19
    %p16 = scmp.ge.s32.totalorder %s15, 4
    %s25 = sphi 0, %s27
    %s28 = sphi 0, %s25
    %s29 = sphi 0, %s28
    %s45 = sphi 0, %s29
    %s49 = sphi 0, %s49
    %s51 = sphi 0, %s49
    %s52 = sphi 0, %s51
    %s66 = sphi 0, %s52
    %s70 = sphi 0, %s70
    %s72 = sphi 0, %s70
    %s73 = sphi 0, %s72
    %s87 = sphi 0, %s73
    %s91 = sphi 0, %s91
    %s93 = sphi 0, %s91
    %s94 = sphi 0, %s93
    %s108 = sphi 0, %s94
    %s112 = sphi 0, %s112
    %s114 = sphi 0, %s112
    %s115 = sphi 0, %s114
    %s129 = sphi 0, %s115
    %s133 = sphi 0, %s133
    %s135 = sphi 0, %s133
    %s136 = sphi 0, %s135
    %s150 = sphi 0, %s136
    %s154 = sphi 0, %s154
    %s156 = sphi 0, %s154
    %s157 = sphi 0, %s156
    %s171 = sphi 0, %s157
    %s175 = sphi 0, %s175
    %s177 = sphi 0, %s175
    %s178 = sphi 0, %s177
    %s192 = sphi 0, %s178
    %s196 = sphi 0, %s196
    %s198 = sphi 0, %s196
    %s199 = sphi 0, %s198
    %s213 = sphi 0, %s199
    %s219 = sphi 0, %s221
    %s222 = sphi 0, %s219
    %s223 = sphi 0, %s222
    %s239 = sphi 0, %s223
  $region4: #{channelwise_additive_coupling_forward.1} parent=0 // loop_header_branch
    %18 = sbr.rel (%p16) target = $region8
  $region5: #{channelwise_additive_coupling_forward.1} parent=0 // loop_body
    %s20 = ssub.s32 %s15, 1
    %s21 = ssub.s32 %s15, 2
    %s22 = sadd.s32 %s15, 1
    %s23 = ssub.s32 %s15, %s22
    %p24 = scmp.eq.s32.totalorder %s23, 0
    %s26 = sadd.s32 %s25, 1
    %s27 = scalar_select %p24, %s25, %s26
    %p30 = pneg %p24
    %p31 = scmp.eq.s32.totalorder %s15, 1
    %p32 = por %p30, %p31
    %p33 = scmp.ne.s32.totalorder %s25, %s28
    %p34 = scmp.eq.s32.totalorder %s15, 0
    %p35 = por %p33, %p34
    %p36 = scmp.ne.s32.totalorder %s25, %s28
    %p37 = scmp.eq.s32.totalorder %s20, 1
    %p38 = por %p36, %p37
    %p39 = scmp.ne.s32.totalorder %s28, %s29
    %p40 = scmp.eq.s32.totalorder %s20, 0
    %p41 = por %p39, %p40
    %p42 = scmp.ne.s32.totalorder %s28, %s29
    %p43 = scmp.eq.s32.totalorder %s21, 1
    %p44 = por %p42, %p43
    %p46 = scmp.ne.s32.totalorder %s29, %s45
    %p47 = scmp.eq.s32.totalorder %s21, 0
    %p48 = por %p46, %p47
    %s50 = sadd.s32 %s49, 1
    %p53 = scmp.eq.s32.totalorder %s15, 1
    %p54 = scmp.ne.s32.totalorder %s49, %s51
    %p55 = scmp.eq.s32.totalorder %s15, 0
    %p56 = por %p54, %p55
    %p57 = scmp.ne.s32.totalorder %s49, %s51
    %p58 = scmp.eq.s32.totalorder %s20, 1
    %p59 = por %p57, %p58
    %p60 = scmp.ne.s32.totalorder %s51, %s52
    %p61 = scmp.eq.s32.totalorder %s20, 0
    %p62 = por %p60, %p61
    %p63 = scmp.ne.s32.totalorder %s51, %s52
    %p64 = scmp.eq.s32.totalorder %s21, 1
    %p65 = por %p63, %p64
    %p67 = scmp.ne.s32.totalorder %s52, %s66
    %p68 = scmp.eq.s32.totalorder %s21, 0
    %p69 = por %p67, %p68
    %s71 = sadd.s32 %s70, 1
    %p74 = scmp.eq.s32.totalorder %s15, 1
    %p75 = scmp.ne.s32.totalorder %s70, %s72
    %p76 = scmp.eq.s32.totalorder %s15, 0
    %p77 = por %p75, %p76
    %p78 = scmp.ne.s32.totalorder %s70, %s72
    %p79 = scmp.eq.s32.totalorder %s20, 1
    %p80 = por %p78, %p79
    %p81 = scmp.ne.s32.totalorder %s72, %s73
    %p82 = scmp.eq.s32.totalorder %s20, 0
    %p83 = por %p81, %p82
    %p84 = scmp.ne.s32.totalorder %s72, %s73
    %p85 = scmp.eq.s32.totalorder %s21, 1
    %p86 = por %p84, %p85
    %p88 = scmp.ne.s32.totalorder %s73, %s87
    %p89 = scmp.eq.s32.totalorder %s21, 0
    %p90 = por %p88, %p89
    %s92 = sadd.s32 %s91, 1
    %p95 = scmp.eq.s32.totalorder %s15, 1
    %p96 = scmp.ne.s32.totalorder %s91, %s93
    %p97 = scmp.eq.s32.totalorder %s15, 0
    %p98 = por %p96, %p97
    %p99 = scmp.ne.s32.totalorder %s91, %s93
    %p100 = scmp.eq.s32.totalorder %s20, 1
    %p101 = por %p99, %p100
    %p102 = scmp.ne.s32.totalorder %s93, %s94
    %p103 = scmp.eq.s32.totalorder %s20, 0
    %p104 = por %p102, %p103
    %p105 = scmp.ne.s32.totalorder %s93, %s94
    %p106 = scmp.eq.s32.totalorder %s21, 1
    %p107 = por %p105, %p106
    %p109 = scmp.ne.s32.totalorder %s94, %s108
    %p110 = scmp.eq.s32.totalorder %s21, 0
    %p111 = por %p109, %p110
    %s113 = sadd.s32 %s112, 1
    %p116 = scmp.eq.s32.totalorder %s15, 1
    %p117 = scmp.ne.s32.totalorder %s112, %s114
    %p118 = scmp.eq.s32.totalorder %s15, 0
    %p119 = por %p117, %p118
    %p120 = scmp.ne.s32.totalorder %s112, %s114
    %p121 = scmp.eq.s32.totalorder %s20, 1
    %p122 = por %p120, %p121
    %p123 = scmp.ne.s32.totalorder %s114, %s115
    %p124 = scmp.eq.s32.totalorder %s20, 0
    %p125 = por %p123, %p124
    %p126 = scmp.ne.s32.totalorder %s114, %s115
    %p127 = scmp.eq.s32.totalorder %s21, 1
    %p128 = por %p126, %p127
    %p130 = scmp.ne.s32.totalorder %s115, %s129
    %p131 = scmp.eq.s32.totalorder %s21, 0
    %p132 = por %p130, %p131
    %s134 = sadd.s32 %s133, 1
    %p137 = scmp.eq.s32.totalorder %s15, 1
    %p138 = scmp.ne.s32.totalorder %s133, %s135
    %p139 = scmp.eq.s32.totalorder %s15, 0
    %p140 = por %p138, %p139
    %p141 = scmp.ne.s32.totalorder %s133, %s135
    %p142 = scmp.eq.s32.totalorder %s20, 1
    %p143 = por %p141, %p142
    %p144 = scmp.ne.s32.totalorder %s135, %s136
    %p145 = scmp.eq.s32.totalorder %s20, 0
    %p146 = por %p144, %p145
    %p147 = scmp.ne.s32.totalorder %s135, %s136
    %p148 = scmp.eq.s32.totalorder %s21, 1
    %p149 = por %p147, %p148
    %p151 = scmp.ne.s32.totalorder %s136, %s150
    %p152 = scmp.eq.s32.totalorder %s21, 0
    %p153 = por %p151, %p152
    %s155 = sadd.s32 %s154, 1
    %p158 = scmp.eq.s32.totalorder %s15, 1
    %p159 = scmp.ne.s32.totalorder %s154, %s156
    %p160 = scmp.eq.s32.totalorder %s15, 0
    %p161 = por %p159, %p160
    %p162 = scmp.ne.s32.totalorder %s154, %s156
    %p163 = scmp.eq.s32.totalorder %s20, 1
    %p164 = por %p162, %p163
    %p165 = scmp.ne.s32.totalorder %s156, %s157
    %p166 = scmp.eq.s32.totalorder %s20, 0
    %p167 = por %p165, %p166
    %p168 = scmp.ne.s32.totalorder %s156, %s157
    %p169 = scmp.eq.s32.totalorder %s21, 1
    %p170 = por %p168, %p169
    %p172 = scmp.ne.s32.totalorder %s157, %s171
    %p173 = scmp.eq.s32.totalorder %s21, 0
    %p174 = por %p172, %p173
    %s176 = sadd.s32 %s175, 1
    %p179 = scmp.eq.s32.totalorder %s15, 1
    %p180 = scmp.ne.s32.totalorder %s175, %s177
    %p181 = scmp.eq.s32.totalorder %s15, 0
    %p182 = por %p180, %p181
    %p183 = scmp.ne.s32.totalorder %s175, %s177
    %p184 = scmp.eq.s32.totalorder %s20, 1
    %p185 = por %p183, %p184
    %p186 = scmp.ne.s32.totalorder %s177, %s178
    %p187 = scmp.eq.s32.totalorder %s20, 0
    %p188 = por %p186, %p187
    %p189 = scmp.ne.s32.totalorder %s177, %s178
    %p190 = scmp.eq.s32.totalorder %s21, 1
    %p191 = por %p189, %p190
    %p193 = scmp.ne.s32.totalorder %s178, %s192
    %p194 = scmp.eq.s32.totalorder %s21, 0
    %p195 = por %p193, %p194
    %s197 = sadd.s32 %s196, 1
    %p200 = scmp.eq.s32.totalorder %s15, 1
    %p201 = scmp.ne.s32.totalorder %s196, %s198
    %p202 = scmp.eq.s32.totalorder %s15, 0
    %p203 = por %p201, %p202
    %p204 = scmp.ne.s32.totalorder %s196, %s198
    %p205 = scmp.eq.s32.totalorder %s20, 1
    %p206 = por %p204, %p205
    %p207 = scmp.ne.s32.totalorder %s198, %s199
    %p208 = scmp.eq.s32.totalorder %s20, 0
    %p209 = por %p207, %p208
    %p210 = scmp.ne.s32.totalorder %s198, %s199
    %p211 = scmp.eq.s32.totalorder %s21, 1
    %p212 = por %p210, %p211
    %p214 = scmp.ne.s32.totalorder %s199, %s213
    %p215 = scmp.eq.s32.totalorder %s21, 0
    %p216 = por %p214, %p215
    %s217 = ssub.s32 %s15, %s22
    %p218 = scmp.eq.s32.totalorder %s217, 0
    %s220 = sadd.s32 %s219, 1
    %s221 = scalar_select %p218, %s219, %s220
    %p224 = pneg %p218
    %p225 = scmp.eq.s32.totalorder %s15, 1
    %p226 = por %p224, %p225
    %p227 = scmp.ne.s32.totalorder %s219, %s222
    %p228 = scmp.eq.s32.totalorder %s15, 0
    %p229 = por %p227, %p228
    %p230 = scmp.ne.s32.totalorder %s219, %s222
    %p231 = scmp.eq.s32.totalorder %s20, 1
    %p232 = por %p230, %p231
    %p233 = scmp.ne.s32.totalorder %s222, %s223
    %p234 = scmp.eq.s32.totalorder %s20, 0
    %p235 = por %p233, %p234
    %p236 = scmp.ne.s32.totalorder %s222, %s223
    %p237 = scmp.eq.s32.totalorder %s21, 1
    %p238 = por %p236, %p237
    %p240 = scmp.ne.s32.totalorder %s223, %s239
    %p241 = scmp.eq.s32.totalorder %s21, 0
    %p242 = por %p240, %p241
    %p243 = scmp.le.s32.totalorder 1, %s15
    %p244 = scmp.lt.s32.totalorder %s15, 3
    %p245 = pnand %p243, %p244
    %p246 = pneg %p245
    // Predicated region
    $region9: #{channelwise_additive_coupling_forward.1} parent=5 // pred_check
      _
    $region10: #{channelwise_additive_coupling_forward.1} parent=5 // pred_check_branch
      %248 = sbr.rel (%p245) target = $region12
    $region11: #{channelwise_additive_coupling_forward.1} parent=5 // pred_region
      %s249 = ssub.s32 %s15, 1
      // Predicated region
      $region13: #{channelwise_additive_coupling_forward.1} parent=11 // pred_check
        %p250 = pneg %p62
      $region14: #{channelwise_additive_coupling_forward.1} parent=11 // pred_check_branch
        %252 = sbr.rel (%p250) target = $region16
      $region15: #{channelwise_additive_coupling_forward.1} parent=11 // pred_region
        _
      $region16: #{channelwise_additive_coupling_forward.1} parent=11 // pred_fallthru
        _
      // Predicated region
      $region17: #{channelwise_additive_coupling_forward.1} parent=11 // pred_check
        %p253 = pneg %p83
      $region18: #{channelwise_additive_coupling_forward.1} parent=11 // pred_check_branch
        %255 = sbr.rel (%p253) target = $region20
      $region19: #{channelwise_additive_coupling_forward.1} parent=11 // pred_region
        _
      $region20: #{channelwise_additive_coupling_forward.1} parent=11 // pred_fallthru
        _
      // Predicated region
      $region21: #{channelwise_additive_coupling_forward.1} parent=11 // pred_check
        %p256 = pneg %p104
      $region22: #{channelwise_additive_coupling_forward.1} parent=11 // pred_check_branch
        %258 = sbr.rel (%p256) target = $region24
      $region23: #{channelwise_additive_coupling_forward.1} parent=11 // pred_region
        _
      $region24: #{channelwise_additive_coupling_forward.1} parent=11 // pred_fallthru
        _
      // Predicated region
      $region25: #{channelwise_additive_coupling_forward.1} parent=11 // pred_check
        %p259 = pneg %p125
      $region26: #{channelwise_additive_coupling_forward.1} parent=11 // pred_check_branch
        %261 = sbr.rel (%p259) target = $region28
      $region27: #{channelwise_additive_coupling_forward.1} parent=11 // pred_region
        _
      $region28: #{channelwise_additive_coupling_forward.1} parent=11 // pred_fallthru
        _
      // Predicated region
      $region29: #{channelwise_additive_coupling_forward.1} parent=11 // pred_check
        %p262 = pneg %p146
      $region30: #{channelwise_additive_coupling_forward.1} parent=11 // pred_check_branch
        %264 = sbr.rel (%p262) target = $region32
      $region31: #{channelwise_additive_coupling_forward.1} parent=11 // pred_region
        _
      $region32: #{channelwise_additive_coupling_forward.1} parent=11 // pred_fallthru
        _
      // Predicated region
      $region33: #{channelwise_additive_coupling_forward.1} parent=11 // pred_check
        %p265 = pneg %p167
      $region34: #{channelwise_additive_coupling_forward.1} parent=11 // pred_check_branch
        %267 = sbr.rel (%p265) target = $region36
      $region35: #{channelwise_additive_coupling_forward.1} parent=11 // pred_region
        _
      $region36: #{channelwise_additive_coupling_forward.1} parent=11 // pred_fallthru
        _
      // Predicated region
      $region37: #{channelwise_additive_coupling_forward.1} parent=11 // pred_check
        %p268 = pneg %p188
      $region38: #{channelwise_additive_coupling_forward.1} parent=11 // pred_check_branch
        %270 = sbr.rel (%p268) target = $region40
      $region39: #{channelwise_additive_coupling_forward.1} parent=11 // pred_region
        _
      $region40: #{channelwise_additive_coupling_forward.1} parent=11 // pred_fallthru
        _
      // Predicated region
      $region41: #{channelwise_additive_coupling_forward.1} parent=11 // pred_check
        %p271 = pneg %p209
      $region42: #{channelwise_additive_coupling_forward.1} parent=11 // pred_check_branch
        %273 = sbr.rel (%p271) target = $region44
      $region43: #{channelwise_additive_coupling_forward.1} parent=11 // pred_region
        _
      $region44: #{channelwise_additive_coupling_forward.1} parent=11 // pred_fallthru
        _
    $region12: #{channelwise_additive_coupling_forward.1} parent=5 // pred_fallthru
      _
    %p274 = scmp.lt.s32.totalorder %s15, 2
    // Predicated region
    $region45: #{channelwise_additive_coupling_forward.1} parent=5 // pred_check
      %p275 = pneg %p274
    $region46: #{channelwise_additive_coupling_forward.1} parent=5 // pred_check_branch
      %277 = sbr.rel (%p275) target = $region48
    $region47: #{channelwise_additive_coupling_forward.1} parent=5 // pred_region
      // Predicated region
      $region49: #{channelwise_additive_coupling_forward.1} parent=47 // pred_check
        %p278 = pneg %p35
      $region50: #{channelwise_additive_coupling_forward.1} parent=47 // pred_check_branch
        %280 = sbr.rel (%p278) target = $region52
      $region51: #{channelwise_additive_coupling_forward.1} parent=47 // pred_region
        %p281 = scmp.lt.s32.totalorder %s15, 1
        %s282 = scalar_select %p281, %s15, 1
        %s283 = smul.addr %s282, 6
        %s284 = smul.addr %s283, 4
        %s285 = scalar_lea.vmem %s0, %s284
      $region52: #{channelwise_additive_coupling_forward.1} parent=47 // pred_fallthru
        _
    $region48: #{channelwise_additive_coupling_forward.1} parent=5 // pred_fallthru
      _
    %p286 = scmp.le.s32.totalorder 1, %s15
    %p287 = scmp.lt.s32.totalorder %s15, 3
    %p288 = pnand %p286, %p287
    %p289 = pneg %p288
    // Predicated region
    $region53: #{channelwise_additive_coupling_forward.1} parent=5 // pred_check
      _
    $region54: #{channelwise_additive_coupling_forward.1} parent=5 // pred_check_branch
      %291 = sbr.rel (%p288) target = $region56
    $region55: #{channelwise_additive_coupling_forward.1} parent=5 // pred_region
      %s292 = ssub.s32 %s15, 1
      %p293 = scmp.lt.s32.totalorder %s20, 1
      %s294 = scalar_select %p293, %s20, 1
      %s295 = smul.addr %s294, 6
      %s296 = smul.addr %s295, 4
      %s297 = scalar_lea.vmem %s0, %s296
      %p298 = pneg %p41
      %p299 = pneg %p38
      %p300 = pneg %p62
      %p301 = pneg %p59
      %p302 = pneg %p83
      %p303 = pneg %p80
      %p304 = pneg %p104
      %p305 = pneg %p101
      %p306 = pneg %p125
      %p307 = pneg %p122
      %p308 = pneg %p146
      %p309 = pneg %p143
      %p310 = pneg %p167
      %p311 = pneg %p164
      %p312 = pneg %p188
      %p313 = pneg %p185
      %p314 = pneg %p209
      %p315 = pneg %p206
      %p316 = pneg %p235
      %p317 = pneg %p232
      %p318 = scmp.lt.s32.totalorder %s20, 1
      %s319 = scalar_select %p318, %s20, 1
      %s320 = smul.addr %s319, 6
      %s321 = smul.addr %s320, 4
      %s322 = scalar_lea.vmem %s9, %s321
      %p323 = scmp.lt.s32.totalorder %s20, 1
      %s324 = scalar_select %p323, %s20, 1
      %s325 = smul.addr %s324, 6
      %s326 = smul.addr %s325, 4
      %s327 = scalar_lea.vmem %s0, %s326
      %p328 = scmp.lt.s32.totalorder %s20, 1
      %s329 = scalar_select %p328, %s20, 1
      %s330 = smul.addr %s329, 6
      %s331 = smul.addr %s330, 4
      %s332 = scalar_lea.vmem %s9, %s331
      %v334 = vld [vmem:[%s327] sm:$0xff]
      %v335 = vld [vmem:[%s327 + $0x8] sm:$0xff]
      %v336 = vld [vmem:[%s327 + $0x10] sm:$0xff]
      %v337 = vld [vmem:[%s8] sm:$0x3f]
      %v338 = vld [vmem:[%s3] sm:$0x3]
      %340 = vset.pattern.permute.xlu0 0
      %341 = vperm.xlu0 %340, %v338
      %v342 = vpop.permute.xlu0 %341
      %v344 = vunpack.c.l.s4 839922192
      %v345 = vunpack.c.0.s8 %v344
      %v346 = vperm.slane %v342, %v345
      %v347 = vrot.slane %v346, 6
      %v349 = vmul.f32 %v334, %v347
      %v350 = vmul.f32 %v335, %v347
      %v351 = vmul.f32 %v336, %v347
      %v352 = vld [vmem:[%s4] sm:$0x3]
      %354 = vset.pattern.permute.xlu0 0
      %355 = vperm.xlu0 %354, %v352
      %v356 = vpop.permute.xlu0 %355
      %v358 = vunpack.c.l.s4 839922192
      %v359 = vunpack.c.0.s8 %v358
      %v360 = vperm.slane %v356, %v359
      %v361 = vrot.slane %v360, 6
      %v363 = vadd.f32 %v349, %v361
      %v364 = vadd.f32 %v350, %v361
      %v365 = vadd.f32 %v351, %v361
      %v366 = vmax.f32 %v363, 0.0
      %v367 = vmax.f32 %v364, 0.0
      %v368 = vmax.f32 %v365, 0.0
      %v369 = vsub.f32 0.0, %v363
      %v370 = vsub.f32 0.0, %v364
      %v371 = vsub.f32 0.0, %v365
      %v372 = vmax.f32 %v369, 0.0
      %v373 = vmax.f32 %v370, 0.0
      %v374 = vmax.f32 %v371, 0.0
      %378 = vst [vmem:[#allocation1] ss:$2 sm:$0xff] %v366
      %s379 = scalar_lea.vmem [#allocation1], 16
      %380 = vst [vmem:[%s379] ss:$2 sm:$0xff] %v367
      %s381 = scalar_lea.vmem [#allocation1], 32
      %382 = vst [vmem:[%s381] ss:$2 sm:$0xff] %v368
      %v383 = vld.sshfl [vmem:[#allocation1] sm:$0xff pattern:$0x75316420]
      %v384 = vld.sshfl [vmem:[#allocation1 + $0x8] sm:$0xff pattern:$0x75316420]
      %v385 = vld.sshfl [vmem:[#allocation1 + $0x10] sm:$0xff pattern:$0x75316420]
      %v386 = vld.sshfl [vmem:[#allocation1 + $0x18] sm:$0xff pattern:$0x75316420]
      %v387 = vld.sshfl [vmem:[#allocation1 + $0x20] sm:$0xff pattern:$0x75316420]
      %v388 = vld.sshfl [vmem:[#allocation1 + $0x28] sm:$0xff pattern:$0x75316420]
      %v389 = vrot.slane %v383, 2
      %v390 = vrot.slane %v384, 2
      %v391 = vrot.slane %v385, 2
      %v392 = vrot.slane %v386, 2
      %v393 = vrot.slane %v387, 2
      %v394 = vrot.slane %v388, 2
      %404 = vst [vmem:[#allocation1] ss:$2 sm:$0xff] %v372
      %s405 = scalar_lea.vmem [#allocation1], 16
      %406 = vst [vmem:[%s405] ss:$2 sm:$0xff] %v373
      %s407 = scalar_lea.vmem [#allocation1], 32
      %408 = vst [vmem:[%s407] ss:$2 sm:$0xff] %v374
      %v409 = vld.sshfl [vmem:[#allocation1] sm:$0xff pattern:$0x75316420]
      %v410 = vld.sshfl [vmem:[#allocation1 + $0x8] sm:$0xff pattern:$0x75316420]
      %v411 = vld.sshfl [vmem:[#allocation1 + $0x10] sm:$0xff pattern:$0x75316420]
      %v412 = vld.sshfl [vmem:[#allocation1 + $0x18] sm:$0xff pattern:$0x75316420]
      %v413 = vld.sshfl [vmem:[#allocation1 + $0x20] sm:$0xff pattern:$0x75316420]
      %v414 = vld.sshfl [vmem:[#allocation1 + $0x28] sm:$0xff pattern:$0x75316420]
      %vm421 = vcmask 1041408
      %v422 = vsel %vm421, %v389, %v409
      %v423 = vsel %vm421, %v390, %v410
      %v424 = vsel %vm421, %v391, %v411
      %v425 = vsel %vm421, %v392, %v412
      %v426 = vsel %vm421, %v393, %v413
      %v427 = vsel %vm421, %v394, %v414
      %v429 = vperm.slane %v337, 0
      %v430 = vperm.slane %v337, 1
      %v431 = vperm.slane %v337, 2
      %v432 = vperm.slane %v337, 3
      %v433 = vperm.slane %v337, 4
      %v434 = vperm.slane %v337, 5
      %v441 = vmul.f32 %v422, %v429
      %v442 = vmul.f32 %v423, %v430
      %v443 = vmul.f32 %v424, %v431
      %v444 = vmul.f32 %v425, %v432
      %v445 = vmul.f32 %v426, %v433
      %v446 = vmul.f32 %v427, %v434
      %447 = vrot.lane.b32.xlu0 %v441, 19
      %v448 = vpop.permute.xlu0 %447
      %449 = vrot.lane.b32.xlu0 %v442, 19
      %v450 = vpop.permute.xlu0 %449
      %451 = vrot.lane.b32.xlu0 %v443, 19
      %v452 = vpop.permute.xlu0 %451
      %453 = vrot.lane.b32.xlu0 %v444, 19
      %v454 = vpop.permute.xlu0 %453
      %455 = vrot.lane.b32.xlu0 %v445, 19
      %v456 = vpop.permute.xlu0 %455
      %457 = vrot.lane.b32.xlu0 %v446, 19
      %v458 = vpop.permute.xlu0 %457
      %v459 = vlaneseq
      %v460 = vand.u32 %v459, 127
      %vm461 = vcmp.lt.s32.totalorder %v460, 19
      %v462 = vsel %vm461, %v456, %v458
      %v463 = vsel %vm461, %v454, %v456
      %v464 = vsel %vm461, %v452, %v454
      %v465 = vsel %vm461, %v450, %v452
      %v466 = vsel %vm461, %v448, %v450
      %v467 = vsel %vm461, %v458, %v448
      %468 = vrot.lane.b32.xlu0 %v441, 18
      %v469 = vpop.permute.xlu0 %468
      %470 = vrot.lane.b32.xlu0 %v442, 18
      %v471 = vpop.permute.xlu0 %470
      %472 = vrot.lane.b32.xlu0 %v443, 18
      %v473 = vpop.permute.xlu0 %472
      %474 = vrot.lane.b32.xlu0 %v444, 18
      %v475 = vpop.permute.xlu0 %474
      %476 = vrot.lane.b32.xlu0 %v445, 18
      %v477 = vpop.permute.xlu0 %476
      %478 = vrot.lane.b32.xlu0 %v446, 18
      %v479 = vpop.permute.xlu0 %478
      %vm480 = vcmp.lt.s32.totalorder %v460, 18
      %v481 = vsel %vm480, %v477, %v479
      %v482 = vsel %vm480, %v475, %v477
      %v483 = vsel %vm480, %v473, %v475
      %v484 = vsel %vm480, %v471, %v473
      %v485 = vsel %vm480, %v469, %v471
      %v486 = vsel %vm480, %v479, %v469
      %487 = vrot.lane.b32.xlu0 %v441, 17
      %v488 = vpop.permute.xlu0 %487
      %489 = vrot.lane.b32.xlu0 %v442, 17
      %v490 = vpop.permute.xlu0 %489
      %491 = vrot.lane.b32.xlu0 %v443, 17
      %v492 = vpop.permute.xlu0 %491
      %493 = vrot.lane.b32.xlu0 %v444, 17
      %v494 = vpop.permute.xlu0 %493
      %495 = vrot.lane.b32.xlu0 %v445, 17
      %v496 = vpop.permute.xlu0 %495
      %497 = vrot.lane.b32.xlu0 %v446, 17
      %v498 = vpop.permute.xlu0 %497
      %vm499 = vcmp.lt.s32.totalorder %v460, 17
      %v500 = vsel %vm499, %v496, %v498
      %v501 = vsel %vm499, %v494, %v496
      %v502 = vsel %vm499, %v492, %v494
      %v503 = vsel %vm499, %v490, %v492
      %v504 = vsel %vm499, %v488, %v490
      %v505 = vsel %vm499, %v498, %v488
      %506 = vrot.lane.b32.xlu0 %v441, 1
      %v507 = vpop.permute.xlu0 %506
      %508 = vrot.lane.b32.xlu0 %v442, 1
      %v509 = vpop.permute.xlu0 %508
      %510 = vrot.lane.b32.xlu0 %v443, 1
      %v511 = vpop.permute.xlu0 %510
      %512 = vrot.lane.b32.xlu0 %v444, 1
      %v513 = vpop.permute.xlu0 %512
      %514 = vrot.lane.b32.xlu0 %v445, 1
      %v515 = vpop.permute.xlu0 %514
      %516 = vrot.lane.b32.xlu0 %v446, 1
      %v517 = vpop.permute.xlu0 %516
      %vm518 = vcmp.lt.s32.totalorder %v460, 1
      %v519 = vsel %vm518, %v515, %v517
      %v520 = vsel %vm518, %v513, %v515
      %v521 = vsel %vm518, %v511, %v513
      %v522 = vsel %vm518, %v509, %v511
      %v523 = vsel %vm518, %v507, %v509
      %v524 = vsel %vm518, %v517, %v507
      %525 = vrot.lane.b32.xlu0 %v441, 127
      %v526 = vpop.permute.xlu0 %525
      %527 = vrot.lane.b32.xlu0 %v442, 127
      %v528 = vpop.permute.xlu0 %527
      %529 = vrot.lane.b32.xlu0 %v443, 127
      %v530 = vpop.permute.xlu0 %529
      %531 = vrot.lane.b32.xlu0 %v444, 127
      %v532 = vpop.permute.xlu0 %531
      %533 = vrot.lane.b32.xlu0 %v445, 127
      %v534 = vpop.permute.xlu0 %533
      %535 = vrot.lane.b32.xlu0 %v446, 127
      %v536 = vpop.permute.xlu0 %535
      %vm537 = vcmp.lt.s32.totalorder %v460, 127
      %v538 = vsel %vm537, %v534, %v536
      %v539 = vsel %vm537, %v532, %v534
      %v540 = vsel %vm537, %v530, %v532
      %v541 = vsel %vm537, %v528, %v530
      %v542 = vsel %vm537, %v526, %v528
      %v543 = vsel %vm537, %v536, %v526
      %544 = vrot.lane.b32.xlu0 %v441, 111
      %v545 = vpop.permute.xlu0 %544
      %546 = vrot.lane.b32.xlu0 %v442, 111
      %v547 = vpop.permute.xlu0 %546
      %548 = vrot.lane.b32.xlu0 %v443, 111
      %v549 = vpop.permute.xlu0 %548
      %550 = vrot.lane.b32.xlu0 %v444, 111
      %v551 = vpop.permute.xlu0 %550
      %552 = vrot.lane.b32.xlu0 %v445, 111
      %v553 = vpop.permute.xlu0 %552
      %554 = vrot.lane.b32.xlu0 %v446, 111
      %v555 = vpop.permute.xlu0 %554
      %vm556 = vcmp.lt.s32.totalorder %v460, 111
      %v557 = vsel %vm556, %v553, %v555
      %v558 = vsel %vm556, %v551, %v553
      %v559 = vsel %vm556, %v549, %v551
      %v560 = vsel %vm556, %v547, %v549
      %v561 = vsel %vm556, %v545, %v547
      %v562 = vsel %vm556, %v555, %v545
      %563 = vrot.lane.b32.xlu0 %v441, 110
      %v564 = vpop.permute.xlu0 %563
      %565 = vrot.lane.b32.xlu0 %v442, 110
      %v566 = vpop.permute.xlu0 %565
      %567 = vrot.lane.b32.xlu0 %v443, 110
      %v568 = vpop.permute.xlu0 %567
      %569 = vrot.lane.b32.xlu0 %v444, 110
      %v570 = vpop.permute.xlu0 %569
      %571 = vrot.lane.b32.xlu0 %v445, 110
      %v572 = vpop.permute.xlu0 %571
      %573 = vrot.lane.b32.xlu0 %v446, 110
      %v574 = vpop.permute.xlu0 %573
      %vm575 = vcmp.lt.s32.totalorder %v460, 110
      %v576 = vsel %vm575, %v572, %v574
      %v577 = vsel %vm575, %v570, %v572
      %v578 = vsel %vm575, %v568, %v570
      %v579 = vsel %vm575, %v566, %v568
      %v580 = vsel %vm575, %v564, %v566
      %v581 = vsel %vm575, %v574, %v564
      %582 = vrot.lane.b32.xlu0 %v441, 109
      %v583 = vpop.permute.xlu0 %582
      %584 = vrot.lane.b32.xlu0 %v442, 109
      %v585 = vpop.permute.xlu0 %584
      %586 = vrot.lane.b32.xlu0 %v443, 109
      %v587 = vpop.permute.xlu0 %586
      %588 = vrot.lane.b32.xlu0 %v444, 109
      %v589 = vpop.permute.xlu0 %588
      %590 = vrot.lane.b32.xlu0 %v445, 109
      %v591 = vpop.permute.xlu0 %590
      %592 = vrot.lane.b32.xlu0 %v446, 109
      %v593 = vpop.permute.xlu0 %592
      %vm594 = vcmp.lt.s32.totalorder %v460, 109
      %v595 = vsel %vm594, %v591, %v593
      %v596 = vsel %vm594, %v589, %v591
      %v597 = vsel %vm594, %v587, %v589
      %v598 = vsel %vm594, %v585, %v587
      %v599 = vsel %vm594, %v583, %v585
      %v600 = vsel %vm594, %v593, %v583
      %v607 = vrot.slane %v486, 4
      %v608 = vrot.slane %v485, 4
      %v609 = vrot.slane %v484, 4
      %v610 = vrot.slane %v483, 4
      %v611 = vrot.slane %v482, 4
      %v612 = vrot.slane %v481, 4
      %v625 = vrot.slane %v524, 4
      %v626 = vrot.slane %v523, 4
      %v627 = vrot.slane %v522, 4
      %v628 = vrot.slane %v521, 4
      %v629 = vrot.slane %v520, 4
      %v630 = vrot.slane %v519, 4
      %v643 = vrot.slane %v542, 4
      %v644 = vrot.slane %v541, 4
      %v645 = vrot.slane %v540, 4
      %v646 = vrot.slane %v539, 4
      %v647 = vrot.slane %v538, 4
      %v648 = vrot.slane %v543, 4
      %v661 = vrot.slane %v580, 4
      %v662 = vrot.slane %v579, 4
      %v663 = vrot.slane %v578, 4
      %v664 = vrot.slane %v577, 4
      %v665 = vrot.slane %v576, 4
      %v666 = vrot.slane %v581, 4
      %vm673 = vcmask 1043456
      %v674 = vsel %vm673, %v467, %v607
      %v675 = vsel %vm673, %v466, %v608
      %v676 = vsel %vm673, %v465, %v609
      %v677 = vsel %vm673, %v464, %v610
      %v678 = vsel %vm673, %v463, %v611
      %v679 = vsel %vm673, %v462, %v612
      %v680 = vsel %vm673, %v505, %v625
      %v681 = vsel %vm673, %v504, %v626
      %v682 = vsel %vm673, %v503, %v627
      %v683 = vsel %vm673, %v502, %v628
      %v684 = vsel %vm673, %v501, %v629
      %v685 = vsel %vm673, %v500, %v630
      %v686 = vsel %vm673, %v441, %v643
      %v687 = vsel %vm673, %v442, %v644
      %v688 = vsel %vm673, %v443, %v645
      %v689 = vsel %vm673, %v444, %v646
      %v690 = vsel %vm673, %v445, %v647
      %v691 = vsel %vm673, %v446, %v648
      %v692 = vsel %vm673, %v561, %v661
      %v693 = vsel %vm673, %v560, %v662
      %v694 = vsel %vm673, %v559, %v663
      %v695 = vsel %vm673, %v558, %v664
      %v696 = vsel %vm673, %v557, %v665
      %v697 = vsel %vm673, %v562, %v666
      %v698 = vpack.c.bf16 %v680, %v674
      %v699 = vpack.c.bf16 %v681, %v675
      %v700 = vpack.c.bf16 %v682, %v676
      %v701 = vpack.c.bf16 %v683, %v677
      %v702 = vpack.c.bf16 %v684, %v678
      %v703 = vpack.c.bf16 %v685, %v679
      %v704 = vpack.c.bf16 %v692, %v686
      %v705 = vpack.c.bf16 %v693, %v687
      %v706 = vpack.c.bf16 %v694, %v688
      %v707 = vpack.c.bf16 %v695, %v689
      %v708 = vpack.c.bf16 %v696, %v690
      %v709 = vpack.c.bf16 %v697, %v691
      %v710 = vpack.c.bf16 %v599, %v599
      %v711 = vpack.c.bf16 %v598, %v598
      %v712 = vpack.c.bf16 %v597, %v597
      %v713 = vpack.c.bf16 %v596, %v596
      %v714 = vpack.c.bf16 %v595, %v595
      %v715 = vpack.c.bf16 %v600, %v600
      %v716 = vld [vmem:[%s1] sm:$0xf]
      %v717 = vld [vmem:[%s1 + $0x4] sm:$0xf]
      %v718 = vld [vmem:[%s1 + $0x8] sm:$0xf]
      %v719 = vld [vmem:[%s1 + $0xc] sm:$0xf]
      %v724 = vunpack.c.l.b16 %v716
      %v725 = vunpack.c.l.b16 %v717
      %v726 = vunpack.c.l.b16 %v718
      %v727 = vunpack.c.l.b16 %v719
      %v728 = vpack.c.b16 %v725, %v724
      %v729 = vpack.c.b16 %v727, %v726
      %vm730 = vcmask 293888
      %v732 = vsel %vm730, %v728, 0
      %v735 = vsel %vm730, %v729, 0
      %v738 = vsel %vm421, %v710, 0
      %v741 = vsel %vm421, %v711, 0
      %v744 = vsel %vm421, %v712, 0
      %v747 = vsel %vm421, %v713, 0
      %v750 = vsel %vm421, %v714, 0
      %v753 = vsel %vm421, %v715, 0
      %755 = vmatpush.bf16.msra.mxu0 0
      %756 = vmatpush.bf16.msra.mxu0 0
      %757 = vmatpush.bf16.msra.mxu0 0
      %758 = vmatpush.bf16.msra.mxu0 0
      %759 = vmatpush.bf16.msra.mxu0 0
      %760 = vmatpush.bf16.msra.mxu0 %v738
      %761 = vmatpush.bf16.msra.mxu0 %v704
      %762 = vmatpush.bf16.msra.mxu0 %v698
      %763 = vmatmul.bf16.gmra.mxu0 %v732
      %v764 = vpop.f32.mrf.mxu0
      %v765 = vadd.f32 0.0, %v764
      %v766 = vpop.f32.mrf.mxu0
      %v767 = vadd.f32 0.0, %v766
      %768 = vmatmul.bf16.gmra.mxu0 %v735
      %v769 = vpop.f32.mrf.mxu0
      %v770 = vadd.f32 0.0, %v769
      %v771 = vpop.f32.mrf.mxu0
      %v772 = vadd.f32 0.0, %v771
      %773 = vdwg.mxu0
      %774 = vmatpush.bf16.msra.mxu0 0
      %775 = vmatpush.bf16.msra.mxu0 0
      %776 = vmatpush.bf16.msra.mxu0 0
      %777 = vmatpush.bf16.msra.mxu0 0
      %778 = vmatpush.bf16.msra.mxu0 0
      %779 = vmatpush.bf16.msra.mxu0 %v741
      %780 = vmatpush.bf16.msra.mxu0 %v705
      %781 = vmatpush.bf16.msra.mxu0 %v699
      %782 = vmatmul.bf16.gmra.mxu0 %v732
      %v783 = vpop.f32.mrf.mxu0
      %v784 = vadd.f32 0.0, %v783
      %v785 = vpop.f32.mrf.mxu0
      %v786 = vadd.f32 0.0, %v785
      %787 = vmatmul.bf16.gmra.mxu0 %v735
      %v788 = vpop.f32.mrf.mxu0
      %v789 = vadd.f32 0.0, %v788
      %v790 = vpop.f32.mrf.mxu0
      %v791 = vadd.f32 0.0, %v790
      %792 = vdwg.mxu0
      %793 = vmatpush.bf16.msra.mxu0 0
      %794 = vmatpush.bf16.msra.mxu0 0
      %795 = vmatpush.bf16.msra.mxu0 0
      %796 = vmatpush.bf16.msra.mxu0 0
      %797 = vmatpush.bf16.msra.mxu0 0
      %798 = vmatpush.bf16.msra.mxu0 %v744
      %799 = vmatpush.bf16.msra.mxu0 %v706
      %800 = vmatpush.bf16.msra.mxu0 %v700
      %801 = vmatmul.bf16.gmra.mxu0 %v732
      %v802 = vpop.f32.mrf.mxu0
      %v803 = vadd.f32 0.0, %v802
      %v804 = vpop.f32.mrf.mxu0
      %v805 = vadd.f32 0.0, %v804
      %806 = vmatmul.bf16.gmra.mxu0 %v735
      %v807 = vpop.f32.mrf.mxu0
      %v808 = vadd.f32 0.0, %v807
      %v809 = vpop.f32.mrf.mxu0
      %v810 = vadd.f32 0.0, %v809
      %811 = vdwg.mxu0
      %812 = vmatpush.bf16.msra.mxu0 0
      %813 = vmatpush.bf16.msra.mxu0 0
      %814 = vmatpush.bf16.msra.mxu0 0
      %815 = vmatpush.bf16.msra.mxu0 0
      %816 = vmatpush.bf16.msra.mxu0 0
      %817 = vmatpush.bf16.msra.mxu0 %v747
      %818 = vmatpush.bf16.msra.mxu0 %v707
      %819 = vmatpush.bf16.msra.mxu0 %v701
      %820 = vmatmul.bf16.gmra.mxu0 %v732
      %v821 = vpop.f32.mrf.mxu0
      %v822 = vadd.f32 0.0, %v821
      %v823 = vpop.f32.mrf.mxu0
      %v824 = vadd.f32 0.0, %v823
      %825 = vmatmul.bf16.gmra.mxu0 %v735
      %v826 = vpop.f32.mrf.mxu0
      %v827 = vadd.f32 0.0, %v826
      %v828 = vpop.f32.mrf.mxu0
      %v829 = vadd.f32 0.0, %v828
      %830 = vdwg.mxu0
      %831 = vmatpush.bf16.msra.mxu0 0
      %832 = vmatpush.bf16.msra.mxu0 0
      %833 = vmatpush.bf16.msra.mxu0 0
      %834 = vmatpush.bf16.msra.mxu0 0
      %835 = vmatpush.bf16.msra.mxu0 0
      %836 = vmatpush.bf16.msra.mxu0 %v750
      %837 = vmatpush.bf16.msra.mxu0 %v708
      %838 = vmatpush.bf16.msra.mxu0 %v702
      %839 = vmatmul.bf16.gmra.mxu0 %v732
      %v840 = vpop.f32.mrf.mxu0
      %v841 = vadd.f32 0.0, %v840
      %v842 = vpop.f32.mrf.mxu0
      %v843 = vadd.f32 0.0, %v842
      %844 = vmatmul.bf16.gmra.mxu0 %v735
      %v845 = vpop.f32.mrf.mxu0
      %v846 = vadd.f32 0.0, %v845
      %v847 = vpop.f32.mrf.mxu0
      %v848 = vadd.f32 0.0, %v847
      %849 = vdwg.mxu0
      %850 = vmatpush.bf16.msra.mxu0 0
      %851 = vmatpush.bf16.msra.mxu0 0
      %852 = vmatpush.bf16.msra.mxu0 0
      %853 = vmatpush.bf16.msra.mxu0 0
      %854 = vmatpush.bf16.msra.mxu0 0
      %855 = vmatpush.bf16.msra.mxu0 %v753
      %856 = vmatpush.bf16.msra.mxu0 %v709
      %857 = vmatpush.bf16.msra.mxu0 %v703
      %858 = vmatmul.bf16.gmra.mxu0 %v732
      %v859 = vpop.f32.mrf.mxu0
      %v860 = vadd.f32 0.0, %v859
      %v861 = vpop.f32.mrf.mxu0
      %v862 = vadd.f32 0.0, %v861
      %863 = vmatmul.bf16.gmra.mxu0 %v735
      %v864 = vpop.f32.mrf.mxu0
      %v865 = vadd.f32 0.0, %v864
      %v866 = vpop.f32.mrf.mxu0
      %v867 = vadd.f32 0.0, %v866
      %868 = vdwg.mxu0
      %v869 = vld [vmem:[%s5] sm:$0xff]
      %v870 = vld [vmem:[%s5 + $0x8] sm:$0xff]
      %v871 = vld [vmem:[%s5 + $0x10] sm:$0xff]
      %v872 = vld [vmem:[%s5 + $0x18] sm:$0xff]
      %874 = vset.pattern.permute.xlu0 0
      %875 = vperm.xlu0 %874, %v869
      %v876 = vpop.permute.xlu0 %875
      %879 = vset.pattern.permute.xlu0 0
      %880 = vperm.xlu0 %879, %v870
      %v881 = vpop.permute.xlu0 %880
      %884 = vset.pattern.permute.xlu0 0
      %885 = vperm.xlu0 %884, %v871
      %v886 = vpop.permute.xlu0 %885
      %889 = vset.pattern.permute.xlu0 0
      %890 = vperm.xlu0 %889, %v872
      %v891 = vpop.permute.xlu0 %890
      %v893 = vmul.f32 %v765, %v876
      %v894 = vmul.f32 %v784, %v876
      %v895 = vmul.f32 %v803, %v876
      %v896 = vmul.f32 %v822, %v876
      %v897 = vmul.f32 %v841, %v876
      %v898 = vmul.f32 %v860, %v876
      %v899 = vmul.f32 %v767, %v881
      %v900 = vmul.f32 %v786, %v881
      %v901 = vmul.f32 %v805, %v881
      %v902 = vmul.f32 %v824, %v881
      %v903 = vmul.f32 %v843, %v881
      %v904 = vmul.f32 %v862, %v881
      %v905 = vmul.f32 %v770, %v886
      %v906 = vmul.f32 %v789, %v886
      %v907 = vmul.f32 %v808, %v886
      %v908 = vmul.f32 %v827, %v886
      %v909 = vmul.f32 %v846, %v886
      %v910 = vmul.f32 %v865, %v886
      %v911 = vmul.f32 %v772, %v891
      %v912 = vmul.f32 %v791, %v891
      %v913 = vmul.f32 %v810, %v891
      %v914 = vmul.f32 %v829, %v891
      %v915 = vmul.f32 %v848, %v891
      %v916 = vmul.f32 %v867, %v891
      %v917 = vld [vmem:[%s6] sm:$0xff]
      %v918 = vld [vmem:[%s6 + $0x8] sm:$0xff]
      %v919 = vld [vmem:[%s6 + $0x10] sm:$0xff]
      %v920 = vld [vmem:[%s6 + $0x18] sm:$0xff]
      %922 = vset.pattern.permute.xlu0 0
      %923 = vperm.xlu0 %922, %v917
      %v924 = vpop.permute.xlu0 %923
      %927 = vset.pattern.permute.xlu0 0
      %928 = vperm.xlu0 %927, %v918
      %v929 = vpop.permute.xlu0 %928
      %932 = vset.pattern.permute.xlu0 0
      %933 = vperm.xlu0 %932, %v919
      %v934 = vpop.permute.xlu0 %933
      %937 = vset.pattern.permute.xlu0 0
      %938 = vperm.xlu0 %937, %v920
      %v939 = vpop.permute.xlu0 %938
      %v941 = vadd.f32 %v893, %v924
      %v942 = vadd.f32 %v894, %v924
      %v943 = vadd.f32 %v895, %v924
      %v944 = vadd.f32 %v896, %v924
      %v945 = vadd.f32 %v897, %v924
      %v946 = vadd.f32 %v898, %v924
      %v947 = vadd.f32 %v899, %v929
      %v948 = vadd.f32 %v900, %v929
      %v949 = vadd.f32 %v901, %v929
      %v950 = vadd.f32 %v902, %v929
      %v951 = vadd.f32 %v903, %v929
      %v952 = vadd.f32 %v904, %v929
      %v953 = vadd.f32 %v905, %v934
      %v954 = vadd.f32 %v906, %v934
      %v955 = vadd.f32 %v907, %v934
      %v956 = vadd.f32 %v908, %v934
      %v957 = vadd.f32 %v909, %v934
      %v958 = vadd.f32 %v910, %v934
      %v959 = vadd.f32 %v911, %v939
      %v960 = vadd.f32 %v912, %v939
      %v961 = vadd.f32 %v913, %v939
      %v962 = vadd.f32 %v914, %v939
      %v963 = vadd.f32 %v915, %v939
      %v964 = vadd.f32 %v916, %v939
      %v965 = vmax.f32 %v941, 0.0
      %v966 = vmax.f32 %v942, 0.0
      %v967 = vmax.f32 %v943, 0.0
      %v968 = vmax.f32 %v944, 0.0
      %v969 = vmax.f32 %v945, 0.0
      %v970 = vmax.f32 %v946, 0.0
      %v971 = vmax.f32 %v947, 0.0
      %v972 = vmax.f32 %v948, 0.0
      %v973 = vmax.f32 %v949, 0.0
      %v974 = vmax.f32 %v950, 0.0
      %v975 = vmax.f32 %v951, 0.0
      %v976 = vmax.f32 %v952, 0.0
      %v977 = vmax.f32 %v953, 0.0
      %v978 = vmax.f32 %v954, 0.0
      %v979 = vmax.f32 %v955, 0.0
      %v980 = vmax.f32 %v956, 0.0
      %v981 = vmax.f32 %v957, 0.0
      %v982 = vmax.f32 %v958, 0.0
      %v983 = vmax.f32 %v959, 0.0
      %v984 = vmax.f32 %v960, 0.0
      %v985 = vmax.f32 %v961, 0.0
      %v986 = vmax.f32 %v962, 0.0
      %v987 = vmax.f32 %v963, 0.0
      %v988 = vmax.f32 %v964, 0.0
      %v989 = vmul.f32 %v965, %v429
      %v990 = vmul.f32 %v966, %v430
      %v991 = vmul.f32 %v967, %v431
      %v992 = vmul.f32 %v968, %v432
      %v993 = vmul.f32 %v969, %v433
      %v994 = vmul.f32 %v970, %v434
      %v995 = vmul.f32 %v971, %v429
      %v996 = vmul.f32 %v972, %v430
      %v997 = vmul.f32 %v973, %v431
      %v998 = vmul.f32 %v974, %v432
      %v999 = vmul.f32 %v975, %v433
      %v1000 = vmul.f32 %v976, %v434
      %v1001 = vmul.f32 %v977, %v429
      %v1002 = vmul.f32 %v978, %v430
      %v1003 = vmul.f32 %v979, %v431
      %v1004 = vmul.f32 %v980, %v432
      %v1005 = vmul.f32 %v981, %v433
      %v1006 = vmul.f32 %v982, %v434
      %v1007 = vmul.f32 %v983, %v429
      %v1008 = vmul.f32 %v984, %v430
      %v1009 = vmul.f32 %v985, %v431
      %v1010 = vmul.f32 %v986, %v432
      %v1011 = vmul.f32 %v987, %v433
      %v1012 = vmul.f32 %v988, %v434
      %v1013 = vpack.c.bf16 %v995, %v989
      %v1014 = vpack.c.bf16 %v996, %v990
      %v1015 = vpack.c.bf16 %v997, %v991
      %v1016 = vpack.c.bf16 %v998, %v992
      %v1017 = vpack.c.bf16 %v999, %v993
      %v1018 = vpack.c.bf16 %v1000, %v994
      %v1019 = vpack.c.bf16 %v1007, %v1001
      %v1020 = vpack.c.bf16 %v1008, %v1002
      %v1021 = vpack.c.bf16 %v1009, %v1003
      %v1022 = vpack.c.bf16 %v1010, %v1004
      %v1023 = vpack.c.bf16 %v1011, %v1005
      %v1024 = vpack.c.bf16 %v1012, %v1006
      %v1025 = vld [vmem:[%s2] sm:$0xf]
      %v1026 = vld [vmem:[%s2 + $0x4] sm:$0xf]
      %v1027 = vld [vmem:[%s2 + $0x8] sm:$0x1]
      %v1031 = vunpack.c.l.b16 %v1025
      %v1032 = vunpack.c.l.b16 %v1026
      %v1033 = vunpack.c.l.b16 %v1027
      %v1034 = vpack.c.b16 %v1032, %v1031
      %v1035 = vpack.c.b16 %v1033, %v1033
      %vm1036 = vcmask 261120
      %v1038 = vsel %vm1036, %v1034, 0
      %v1041 = vsel %vm1036, %v1035, 0
      %1043 = vmatpush.bf16.msra.mxu0 0
      %1044 = vmatpush.bf16.msra.mxu0 0
      %1045 = vmatpush.bf16.msra.mxu0 0
      %1046 = vmatpush.bf16.msra.mxu0 0
      %1047 = vmatpush.bf16.msra.mxu0 0
      %1048 = vmatpush.bf16.msra.mxu0 0
      %1049 = vmatpush.bf16.msra.mxu0 %v1019
      %1050 = vmatpush.bf16.msra.mxu0 %v1013
      %1051 = vmatmul.bf16.gmra.mxu0 %v1038
      %v1052 = vpop.f32.mrf.mxu0
      %v1053 = vadd.f32 0.0, %v1052
      %v1054 = vpop.f32.mrf.mxu0
      %v1055 = vadd.f32 0.0, %v1054
      %1056 = vmatmul.bf16.gmra.mxu0 %v1041
      %v1057 = vpop.f32.mrf.mxu0
      %v1058 = vadd.f32 0.0, %v1057
      %v1059 = vpop.f32.mrf.mxu0
      %1060 = vdwg.mxu0
      %1061 = vmatpush.bf16.msra.mxu0 0
      %1062 = vmatpush.bf16.msra.mxu0 0
      %1063 = vmatpush.bf16.msra.mxu0 0
      %1064 = vmatpush.bf16.msra.mxu0 0
      %1065 = vmatpush.bf16.msra.mxu0 0
      %1066 = vmatpush.bf16.msra.mxu0 0
      %1067 = vmatpush.bf16.msra.mxu0 %v1020
      %1068 = vmatpush.bf16.msra.mxu0 %v1014
      %1069 = vmatmul.bf16.gmra.mxu0 %v1038
      %v1070 = vpop.f32.mrf.mxu0
      %v1071 = vadd.f32 0.0, %v1070
      %v1072 = vpop.f32.mrf.mxu0
      %v1073 = vadd.f32 0.0, %v1072
      %1074 = vmatmul.bf16.gmra.mxu0 %v1041
      %v1075 = vpop.f32.mrf.mxu0
      %v1076 = vadd.f32 0.0, %v1075
      %v1077 = vpop.f32.mrf.mxu0
      %1078 = vdwg.mxu0
      %1079 = vmatpush.bf16.msra.mxu0 0
      %1080 = vmatpush.bf16.msra.mxu0 0
      %1081 = vmatpush.bf16.msra.mxu0 0
      %1082 = vmatpush.bf16.msra.mxu0 0
      %1083 = vmatpush.bf16.msra.mxu0 0
      %1084 = vmatpush.bf16.msra.mxu0 0
      %1085 = vmatpush.bf16.msra.mxu0 %v1021
      %1086 = vmatpush.bf16.msra.mxu0 %v1015
      %1087 = vmatmul.bf16.gmra.mxu0 %v1038
      %v1088 = vpop.f32.mrf.mxu0
      %v1089 = vadd.f32 0.0, %v1088
      %v1090 = vpop.f32.mrf.mxu0
      %v1091 = vadd.f32 0.0, %v1090
      %1092 = vmatmul.bf16.gmra.mxu0 %v1041
      %v1093 = vpop.f32.mrf.mxu0
      %v1094 = vadd.f32 0.0, %v1093
      %v1095 = vpop.f32.mrf.mxu0
      %1096 = vdwg.mxu0
      %1097 = vmatpush.bf16.msra.mxu0 0
      %1098 = vmatpush.bf16.msra.mxu0 0
      %1099 = vmatpush.bf16.msra.mxu0 0
      %1100 = vmatpush.bf16.msra.mxu0 0
      %1101 = vmatpush.bf16.msra.mxu0 0
      %1102 = vmatpush.bf16.msra.mxu0 0
      %1103 = vmatpush.bf16.msra.mxu0 %v1022
      %1104 = vmatpush.bf16.msra.mxu0 %v1016
      %1105 = vmatmul.bf16.gmra.mxu0 %v1038
      %v1106 = vpop.f32.mrf.mxu0
      %v1107 = vadd.f32 0.0, %v1106
      %v1108 = vpop.f32.mrf.mxu0
      %v1109 = vadd.f32 0.0, %v1108
      %1110 = vmatmul.bf16.gmra.mxu0 %v1041
      %v1111 = vpop.f32.mrf.mxu0
      %v1112 = vadd.f32 0.0, %v1111
      %v1113 = vpop.f32.mrf.mxu0
      %1114 = vdwg.mxu0
      %1115 = vmatpush.bf16.msra.mxu0 0
      %1116 = vmatpush.bf16.msra.mxu0 0
      %1117 = vmatpush.bf16.msra.mxu0 0
      %1118 = vmatpush.bf16.msra.mxu0 0
      %1119 = vmatpush.bf16.msra.mxu0 0
      %1120 = vmatpush.bf16.msra.mxu0 0
      %1121 = vmatpush.bf16.msra.mxu0 %v1023
      %1122 = vmatpush.bf16.msra.mxu0 %v1017
      %1123 = vmatmul.bf16.gmra.mxu0 %v1038
      %v1124 = vpop.f32.mrf.mxu0
      %v1125 = vadd.f32 0.0, %v1124
      %v1126 = vpop.f32.mrf.mxu0
      %v1127 = vadd.f32 0.0, %v1126
      %1128 = vmatmul.bf16.gmra.mxu0 %v1041
      %v1129 = vpop.f32.mrf.mxu0
      %v1130 = vadd.f32 0.0, %v1129
      %v1131 = vpop.f32.mrf.mxu0
      %1132 = vdwg.mxu0
      %1133 = vmatpush.bf16.msra.mxu0 0
      %1134 = vmatpush.bf16.msra.mxu0 0
      %1135 = vmatpush.bf16.msra.mxu0 0
      %1136 = vmatpush.bf16.msra.mxu0 0
      %1137 = vmatpush.bf16.msra.mxu0 0
      %1138 = vmatpush.bf16.msra.mxu0 0
      %1139 = vmatpush.bf16.msra.mxu0 %v1024
      %1140 = vmatpush.bf16.msra.mxu0 %v1018
      %1141 = vmatmul.bf16.gmra.mxu0 %v1038
      %v1142 = vpop.f32.mrf.mxu0
      %v1143 = vadd.f32 0.0, %v1142
      %v1144 = vpop.f32.mrf.mxu0
      %v1145 = vadd.f32 0.0, %v1144
      %1146 = vmatmul.bf16.gmra.mxu0 %v1041
      %v1147 = vpop.f32.mrf.mxu0
      %v1148 = vadd.f32 0.0, %v1147
      %v1149 = vpop.f32.mrf.mxu0
      %1150 = vdwg.mxu0
      %1151 = vrot.lane.b32.xlu0 %v1053, 19
      %v1152 = vpop.permute.xlu0 %1151
      %1153 = vrot.lane.b32.xlu0 %v1071, 19
      %v1154 = vpop.permute.xlu0 %1153
      %1155 = vrot.lane.b32.xlu0 %v1089, 19
      %v1156 = vpop.permute.xlu0 %1155
      %1157 = vrot.lane.b32.xlu0 %v1107, 19
      %v1158 = vpop.permute.xlu0 %1157
      %1159 = vrot.lane.b32.xlu0 %v1125, 19
      %v1160 = vpop.permute.xlu0 %1159
      %1161 = vrot.lane.b32.xlu0 %v1143, 19
      %v1162 = vpop.permute.xlu0 %1161
      %v1163 = vsel %vm461, %v1160, %v1162
      %v1164 = vsel %vm461, %v1158, %v1160
      %v1165 = vsel %vm461, %v1156, %v1158
      %v1166 = vsel %vm461, %v1154, %v1156
      %v1167 = vsel %vm461, %v1152, %v1154
      %v1168 = vsel %vm461, %v1162, %v1152
      %v1175 = vrot.slane %v1053, 2
      %v1176 = vrot.slane %v1071, 2
      %v1177 = vrot.slane %v1089, 2
      %v1178 = vrot.slane %v1107, 2
      %v1179 = vrot.slane %v1125, 2
      %v1180 = vrot.slane %v1143, 2
      %1187 = vrot.lane.b32.xlu0 %v1175, 18
      %v1188 = vpop.permute.xlu0 %1187
      %1189 = vrot.lane.b32.xlu0 %v1176, 18
      %v1190 = vpop.permute.xlu0 %1189
      %1191 = vrot.lane.b32.xlu0 %v1177, 18
      %v1192 = vpop.permute.xlu0 %1191
      %1193 = vrot.lane.b32.xlu0 %v1178, 18
      %v1194 = vpop.permute.xlu0 %1193
      %1195 = vrot.lane.b32.xlu0 %v1179, 18
      %v1196 = vpop.permute.xlu0 %1195
      %1197 = vrot.lane.b32.xlu0 %v1180, 18
      %v1198 = vpop.permute.xlu0 %1197
      %v1199 = vsel %vm480, %v1196, %v1198
      %v1200 = vsel %vm480, %v1194, %v1196
      %v1201 = vsel %vm480, %v1192, %v1194
      %v1202 = vsel %vm480, %v1190, %v1192
      %v1203 = vsel %vm480, %v1188, %v1190
      %v1204 = vsel %vm480, %v1198, %v1188
      %v1205 = vadd.f32 %v1168, %v1204
      %v1206 = vadd.f32 %v1167, %v1203
      %v1207 = vadd.f32 %v1166, %v1202
      %v1208 = vadd.f32 %v1165, %v1201
      %v1209 = vadd.f32 %v1164, %v1200
      %v1210 = vadd.f32 %v1163, %v1199
      %v1211 = vrot.slane %v1053, 4
      %v1212 = vrot.slane %v1071, 4
      %v1213 = vrot.slane %v1089, 4
      %v1214 = vrot.slane %v1107, 4
      %v1215 = vrot.slane %v1125, 4
      %v1216 = vrot.slane %v1143, 4
      %1223 = vrot.lane.b32.xlu0 %v1211, 17
      %v1224 = vpop.permute.xlu0 %1223
      %1225 = vrot.lane.b32.xlu0 %v1212, 17
      %v1226 = vpop.permute.xlu0 %1225
      %1227 = vrot.lane.b32.xlu0 %v1213, 17
      %v1228 = vpop.permute.xlu0 %1227
      %1229 = vrot.lane.b32.xlu0 %v1214, 17
      %v1230 = vpop.permute.xlu0 %1229
      %1231 = vrot.lane.b32.xlu0 %v1215, 17
      %v1232 = vpop.permute.xlu0 %1231
      %1233 = vrot.lane.b32.xlu0 %v1216, 17
      %v1234 = vpop.permute.xlu0 %1233
      %v1235 = vsel %vm499, %v1232, %v1234
      %v1236 = vsel %vm499, %v1230, %v1232
      %v1237 = vsel %vm499, %v1228, %v1230
      %v1238 = vsel %vm499, %v1226, %v1228
      %v1239 = vsel %vm499, %v1224, %v1226
      %v1240 = vsel %vm499, %v1234, %v1224
      %v1241 = vadd.f32 %v1205, %v1240
      %v1242 = vadd.f32 %v1206, %v1239
      %v1243 = vadd.f32 %v1207, %v1238
      %v1244 = vadd.f32 %v1208, %v1237
      %v1245 = vadd.f32 %v1209, %v1236
      %v1246 = vadd.f32 %v1210, %v1235
      %v1247 = vrot.slane %v1053, 6
      %v1248 = vrot.slane %v1071, 6
      %v1249 = vrot.slane %v1089, 6
      %v1250 = vrot.slane %v1107, 6
      %v1251 = vrot.slane %v1125, 6
      %v1252 = vrot.slane %v1143, 6
      %1259 = vrot.lane.b32.xlu0 %v1247, 1
      %v1260 = vpop.permute.xlu0 %1259
      %1261 = vrot.lane.b32.xlu0 %v1248, 1
      %v1262 = vpop.permute.xlu0 %1261
      %1263 = vrot.lane.b32.xlu0 %v1249, 1
      %v1264 = vpop.permute.xlu0 %1263
      %1265 = vrot.lane.b32.xlu0 %v1250, 1
      %v1266 = vpop.permute.xlu0 %1265
      %1267 = vrot.lane.b32.xlu0 %v1251, 1
      %v1268 = vpop.permute.xlu0 %1267
      %1269 = vrot.lane.b32.xlu0 %v1252, 1
      %v1270 = vpop.permute.xlu0 %1269
      %v1271 = vsel %vm518, %v1268, %v1270
      %v1272 = vsel %vm518, %v1266, %v1268
      %v1273 = vsel %vm518, %v1264, %v1266
      %v1274 = vsel %vm518, %v1262, %v1264
      %v1275 = vsel %vm518, %v1260, %v1262
      %v1276 = vsel %vm518, %v1270, %v1260
      %v1277 = vadd.f32 %v1241, %v1276
      %v1278 = vadd.f32 %v1242, %v1275
      %v1279 = vadd.f32 %v1243, %v1274
      %v1280 = vadd.f32 %v1244, %v1273
      %v1281 = vadd.f32 %v1245, %v1272
      %v1282 = vadd.f32 %v1246, %v1271
      %v1283 = vadd.f32 %v1277, %v1055
      %v1284 = vadd.f32 %v1278, %v1073
      %v1285 = vadd.f32 %v1279, %v1091
      %v1286 = vadd.f32 %v1280, %v1109
      %v1287 = vadd.f32 %v1281, %v1127
      %v1288 = vadd.f32 %v1282, %v1145
      %v1295 = vrot.slane %v1055, 2
      %v1296 = vrot.slane %v1073, 2
      %v1297 = vrot.slane %v1091, 2
      %v1298 = vrot.slane %v1109, 2
      %v1299 = vrot.slane %v1127, 2
      %v1300 = vrot.slane %v1145, 2
      %1307 = vrot.lane.b32.xlu0 %v1295, 127
      %v1308 = vpop.permute.xlu0 %1307
      %1309 = vrot.lane.b32.xlu0 %v1296, 127
      %v1310 = vpop.permute.xlu0 %1309
      %1311 = vrot.lane.b32.xlu0 %v1297, 127
      %v1312 = vpop.permute.xlu0 %1311
      %1313 = vrot.lane.b32.xlu0 %v1298, 127
      %v1314 = vpop.permute.xlu0 %1313
      %1315 = vrot.lane.b32.xlu0 %v1299, 127
      %v1316 = vpop.permute.xlu0 %1315
      %1317 = vrot.lane.b32.xlu0 %v1300, 127
      %v1318 = vpop.permute.xlu0 %1317
      %v1319 = vsel %vm537, %v1316, %v1318
      %v1320 = vsel %vm537, %v1314, %v1316
      %v1321 = vsel %vm537, %v1312, %v1314
      %v1322 = vsel %vm537, %v1310, %v1312
      %v1323 = vsel %vm537, %v1308, %v1310
      %v1324 = vsel %vm537, %v1318, %v1308
      %v1325 = vadd.f32 %v1283, %v1323
      %v1326 = vadd.f32 %v1284, %v1322
      %v1327 = vadd.f32 %v1285, %v1321
      %v1328 = vadd.f32 %v1286, %v1320
      %v1329 = vadd.f32 %v1287, %v1319
      %v1330 = vadd.f32 %v1288, %v1324
      %v1331 = vrot.slane %v1055, 4
      %v1332 = vrot.slane %v1073, 4
      %v1333 = vrot.slane %v1091, 4
      %v1334 = vrot.slane %v1109, 4
      %v1335 = vrot.slane %v1127, 4
      %v1336 = vrot.slane %v1145, 4
      %1343 = vrot.lane.b32.xlu0 %v1331, 111
      %v1344 = vpop.permute.xlu0 %1343
      %1345 = vrot.lane.b32.xlu0 %v1332, 111
      %v1346 = vpop.permute.xlu0 %1345
      %1347 = vrot.lane.b32.xlu0 %v1333, 111
      %v1348 = vpop.permute.xlu0 %1347
      %1349 = vrot.lane.b32.xlu0 %v1334, 111
      %v1350 = vpop.permute.xlu0 %1349
      %1351 = vrot.lane.b32.xlu0 %v1335, 111
      %v1352 = vpop.permute.xlu0 %1351
      %1353 = vrot.lane.b32.xlu0 %v1336, 111
      %v1354 = vpop.permute.xlu0 %1353
      %v1355 = vsel %vm556, %v1352, %v1354
      %v1356 = vsel %vm556, %v1350, %v1352
      %v1357 = vsel %vm556, %v1348, %v1350
      %v1358 = vsel %vm556, %v1346, %v1348
      %v1359 = vsel %vm556, %v1344, %v1346
      %v1360 = vsel %vm556, %v1354, %v1344
      %v1361 = vadd.f32 %v1325, %v1359
      %v1362 = vadd.f32 %v1326, %v1358
      %v1363 = vadd.f32 %v1327, %v1357
      %v1364 = vadd.f32 %v1328, %v1356
      %v1365 = vadd.f32 %v1329, %v1355
      %v1366 = vadd.f32 %v1330, %v1360
      %v1367 = vrot.slane %v1055, 6
      %v1368 = vrot.slane %v1073, 6
      %v1369 = vrot.slane %v1091, 6
      %v1370 = vrot.slane %v1109, 6
      %v1371 = vrot.slane %v1127, 6
      %v1372 = vrot.slane %v1145, 6
      %1379 = vrot.lane.b32.xlu0 %v1367, 110
      %v1380 = vpop.permute.xlu0 %1379
      %1381 = vrot.lane.b32.xlu0 %v1368, 110
      %v1382 = vpop.permute.xlu0 %1381
      %1383 = vrot.lane.b32.xlu0 %v1369, 110
      %v1384 = vpop.permute.xlu0 %1383
      %1385 = vrot.lane.b32.xlu0 %v1370, 110
      %v1386 = vpop.permute.xlu0 %1385
      %1387 = vrot.lane.b32.xlu0 %v1371, 110
      %v1388 = vpop.permute.xlu0 %1387
      %1389 = vrot.lane.b32.xlu0 %v1372, 110
      %v1390 = vpop.permute.xlu0 %1389
      %v1391 = vsel %vm575, %v1388, %v1390
      %v1392 = vsel %vm575, %v1386, %v1388
      %v1393 = vsel %vm575, %v1384, %v1386
      %v1394 = vsel %vm575, %v1382, %v1384
      %v1395 = vsel %vm575, %v1380, %v1382
      %v1396 = vsel %vm575, %v1390, %v1380
      %v1397 = vadd.f32 %v1361, %v1395
      %v1398 = vadd.f32 %v1362, %v1394
      %v1399 = vadd.f32 %v1363, %v1393
      %v1400 = vadd.f32 %v1364, %v1392
      %v1401 = vadd.f32 %v1365, %v1391
      %v1402 = vadd.f32 %v1366, %v1396
      %1403 = vrot.lane.b32.xlu0 %v1058, 109
      %v1404 = vpop.permute.xlu0 %1403
      %1405 = vrot.lane.b32.xlu0 %v1076, 109
      %v1406 = vpop.permute.xlu0 %1405
      %1407 = vrot.lane.b32.xlu0 %v1094, 109
      %v1408 = vpop.permute.xlu0 %1407
      %1409 = vrot.lane.b32.xlu0 %v1112, 109
      %v1410 = vpop.permute.xlu0 %1409
      %1411 = vrot.lane.b32.xlu0 %v1130, 109
      %v1412 = vpop.permute.xlu0 %1411
      %1413 = vrot.lane.b32.xlu0 %v1148, 109
      %v1414 = vpop.permute.xlu0 %1413
      %v1415 = vsel %vm594, %v1412, %v1414
      %v1416 = vsel %vm594, %v1410, %v1412
      %v1417 = vsel %vm594, %v1408, %v1410
      %v1418 = vsel %vm594, %v1406, %v1408
      %v1419 = vsel %vm594, %v1404, %v1406
      %v1420 = vsel %vm594, %v1414, %v1404
      %v1421 = vadd.f32 %v1397, %v1419
      %v1422 = vadd.f32 %v1398, %v1418
      %v1423 = vadd.f32 %v1399, %v1417
      %v1424 = vadd.f32 %v1400, %v1416
      %v1425 = vadd.f32 %v1401, %v1415
      %v1426 = vadd.f32 %v1402, %v1420
      %v1433 = vrot.slane %v1422, 4
      %v1434 = vrot.slane %v1424, 4
      %v1435 = vrot.slane %v1426, 4
      %v1436 = vsel %vm673, %v1421, %v1433
      %v1437 = vsel %vm673, %v1423, %v1434
      %v1438 = vsel %vm673, %v1425, %v1435
      %v1442 = vadd.f32 %v334, %v1436
      %v1443 = vadd.f32 %v335, %v1437
      %v1444 = vadd.f32 %v336, %v1438
      %v1445 = vld [vmem:[%s7] sm:$0x3]
      %1447 = vset.pattern.permute.xlu0 0
      %1448 = vperm.xlu0 %1447, %v1445
      %v1449 = vpop.permute.xlu0 %1448
      %v1451 = vunpack.c.l.s4 839922192
      %v1452 = vunpack.c.0.s8 %v1451
      %v1453 = vperm.slane %v1449, %v1452
      %v1455 = vadd.f32 %v1442, %v1453
      %v1456 = vadd.f32 %v1443, %v1453
      %v1457 = vadd.f32 %v1444, %v1453
      %1461 = vst [vmem:[#allocation1] ss:$2 sm:$0xff] %v1455
      %s1462 = scalar_lea.vmem [#allocation1], 16
      %1463 = vst [vmem:[%s1462] ss:$2 sm:$0xff] %v1456
      %s1464 = scalar_lea.vmem [#allocation1], 32
      %1465 = vst [vmem:[%s1464] ss:$2 sm:$0xff] %v1457
      %v1466 = vld.sshfl [vmem:[#allocation1] sm:$0xff pattern:$0x75316420]
      %v1467 = vld.sshfl [vmem:[#allocation1 + $0x8] sm:$0xff pattern:$0x75316420]
      %v1468 = vld.sshfl [vmem:[#allocation1 + $0x10] sm:$0xff pattern:$0x75316420]
      %v1469 = vld.sshfl [vmem:[#allocation1 + $0x18] sm:$0xff pattern:$0x75316420]
      %v1470 = vld.sshfl [vmem:[#allocation1 + $0x20] sm:$0xff pattern:$0x75316420]
      %v1471 = vld.sshfl [vmem:[#allocation1 + $0x28] sm:$0xff pattern:$0x75316420]
      %1481 = vst [vmem:[#allocation1] ss:$2 sm:$0xff] %v334
      %s1482 = scalar_lea.vmem [#allocation1], 16
      %1483 = vst [vmem:[%s1482] ss:$2 sm:$0xff] %v335
      %s1484 = scalar_lea.vmem [#allocation1], 32
      %1485 = vst [vmem:[%s1484] ss:$2 sm:$0xff] %v336
      %v1486 = vld.sshfl [vmem:[#allocation1] sm:$0xff pattern:$0x75316420]
      %v1487 = vld.sshfl [vmem:[#allocation1 + $0x8] sm:$0xff pattern:$0x75316420]
      %v1488 = vld.sshfl [vmem:[#allocation1 + $0x10] sm:$0xff pattern:$0x75316420]
      %v1489 = vld.sshfl [vmem:[#allocation1 + $0x18] sm:$0xff pattern:$0x75316420]
      %v1490 = vld.sshfl [vmem:[#allocation1 + $0x20] sm:$0xff pattern:$0x75316420]
      %v1491 = vld.sshfl [vmem:[#allocation1 + $0x28] sm:$0xff pattern:$0x75316420]
      %v1498 = vsel %vm421, %v1466, %v1486
      %v1499 = vsel %vm421, %v1467, %v1487
      %v1500 = vsel %vm421, %v1468, %v1488
      %v1501 = vsel %vm421, %v1469, %v1489
      %v1502 = vsel %vm421, %v1470, %v1490
      %v1503 = vsel %vm421, %v1471, %v1491
      %v1510 = vrot.slane %v1499, 4
      %v1511 = vrot.slane %v1501, 4
      %v1512 = vrot.slane %v1503, 4
      %v1513 = vsel %vm673, %v1498, %v1510
      %v1514 = vsel %vm673, %v1500, %v1511
      %v1515 = vsel %vm673, %v1502, %v1512
      %1519 = vst [vmem:[%s332] sm:$0xff] %v1513
      %1520 = vst [vmem:[%s332 + $0x8] sm:$0xff] %v1514
      %1521 = vst [vmem:[%s332 + $0x10] sm:$0xff] %v1515
      %p1522 = scmp.lt.s32.totalorder %s20, 1
      %s1523 = scalar_select %p1522, %s20, 1
      %s1524 = smul.addr %s1523, 6
      %s1525 = smul.addr %s1524, 4
      %s1526 = scalar_lea.vmem %s9, %s1525
      // Predicated region
      $region57: #{channelwise_additive_coupling_forward.1} parent=55 // pred_check
        %p1527 = pneg %p232
      $region58: #{channelwise_additive_coupling_forward.1} parent=55 // pred_check_branch
        %1529 = sbr.rel (%p1527) target = $region60
      $region59: #{channelwise_additive_coupling_forward.1} parent=55 // pred_region
        _
      $region60: #{channelwise_additive_coupling_forward.1} parent=55 // pred_fallthru
        _
    $region56: #{channelwise_additive_coupling_forward.1} parent=5 // pred_fallthru
      _
    %p1530 = scmp.le.s32.totalorder 2, %s15
    // Predicated region
    $region61: #{channelwise_additive_coupling_forward.1} parent=5 // pred_check
      %p1531 = pneg %p1530
    $region62: #{channelwise_additive_coupling_forward.1} parent=5 // pred_check_branch
      %1533 = sbr.rel (%p1531) target = $region64
    $region63: #{channelwise_additive_coupling_forward.1} parent=5 // pred_region
      %s1534 = ssub.s32 %s15, 2
      // Predicated region
      $region65: #{channelwise_additive_coupling_forward.1} parent=63 // pred_check
        %p1535 = pneg %p238
      $region66: #{channelwise_additive_coupling_forward.1} parent=63 // pred_check_branch
        %1537 = sbr.rel (%p1535) target = $region68
      $region67: #{channelwise_additive_coupling_forward.1} parent=63 // pred_region
        %p1538 = scmp.lt.s32.totalorder %s21, 1
        %s1539 = scalar_select %p1538, %s21, 1
        %s1540 = smul.addr %s1539, 6
        %s1541 = smul.addr %s1540, 4
        %s1542 = scalar_lea.vmem %s9, %s1541
      $region68: #{channelwise_additive_coupling_forward.1} parent=63 // pred_fallthru
        _
    $region64: #{channelwise_additive_coupling_forward.1} parent=5 // pred_fallthru
      _
  $region6: #{channelwise_additive_coupling_forward.1} parent=0 // loop_footer
    %s19 = sadd.s32 1, %s15
  $region7: #{channelwise_additive_coupling_forward.1} parent=0 // loop_footer_branch
    %14 = sbr.rel target = $region3
  $region8: #{channelwise_additive_coupling_forward.1} parent=0 // loop_exit
    _

</llo_original>
